<compile_context>
chip_gen: v5e
topology: v5e:2x2
jax: 0.10.0
libtpu: 0.0.40
codegen_flags: <defaults>
</compile_context>

<pallas_src>
import math
import functools

import jax
import jax.numpy as jnp
from jax import lax
from jax.experimental import pallas as pl
from jax.experimental.pallas import tpu as pltpu


# ----------------------------------------------------------------------------
# Kernel
# ----------------------------------------------------------------------------
def mha_kernel(q_ref, k_ref, v_ref,
               wq_ref, wk_ref, bk_ref, wv_ref, bv_ref, wo_ref, bo_ref,
               out_ref, *, h: int, d_pad: int, compute_dtype):
    """One (bt, S, D) batch tile per grid step.

    Weights arrive pre-transposed ((in, out) layout), per-head zero-padded to
    d_pad lanes, with 1/sqrt(d_k) folded into w_q.
    """
    bt, S, D = q_ref.shape
    f32 = jnp.float32
    cd = compute_dtype

    def cast(x):
        return x if x.dtype == cd else x.astype(cd)

    # ---- input projections: (bt,S,D) @ (D, h*d_pad), f32 accumulation ------
    q_ = jnp.dot(cast(q_ref[...]), wq_ref[...], preferred_element_type=f32)
    k_ = jnp.dot(cast(k_ref[...]), wk_ref[...], preferred_element_type=f32) + bk_ref[...]
    v_ = jnp.dot(cast(v_ref[...]), wv_ref[...], preferred_element_type=f32) + bv_ref[...]

    qk_dims = (((2,), (2,)), ((0,), (0,)))   # (bt,S,d) x (bt,S,d) -> (bt,S,S)
    pv_dims = (((2,), (1,)), ((0,), (0,)))   # (bt,S,S) x (bt,S,d) -> (bt,S,d)
    approx = cd != jnp.float32               # approx recip only on low-prec path

    # ---- per-head attention, output projection fused into the head loop ----
    acc = jnp.zeros((bt, S, D), f32)
    for head in range(h):                    # static, small h (unrolled)
        lo, hi = head * d_pad, (head + 1) * d_pad
        qh = cast(q_[..., lo:hi])
        kh = cast(k_[..., lo:hi])
        vh = cast(v_[..., lo:hi])

        s = lax.dot_general(qh, kh, qk_dims, preferred_element_type=f32)
        m = jnp.max(s, axis=-1, keepdims=True)
        p = jnp.exp(s - m)                                   # unnormalized
        l = jnp.sum(p, axis=-1, keepdims=True)               # (bt, S, 1)

        o_h = lax.dot_general(cast(p), vh, pv_dims, preferred_element_type=f32)
        # normalize AFTER PV: S*d_pad multiplies instead of S*S
        o_h = o_h * pl.reciprocal(l, approx=approx)

        # fused output projection for this head: (bt,S,d_pad) @ (d_pad, D)
        acc = acc + jnp.dot(cast(o_h), wo_ref[lo:hi, :],
                            preferred_element_type=f32)

    out_ref[...] = (acc + bo_ref[...]).astype(out_ref.dtype)


# ----------------------------------------------------------------------------
# Wrapper helpers
# ----------------------------------------------------------------------------
def _chip_budget():
    """Pick per-generation tiling/VMEM budgets (v7x: 64 MiB/TC, 2 TCs;
    v5e/v6e: 128 MiB, 1 TC)."""
    vmem = 128 * 1024 * 1024
    try:
        info = pltpu.get_tpu_info()
        vmem = int(getattr(info, "vmem_capacity_bytes", vmem))
    except Exception:
        pass
    if vmem <= 80 * 1024 * 1024:     # v7x-like
        return dict(min_steps=2, target_rows=256,
                    vmem_limit=48 * 1024 * 1024,
                    budget=40 * 1024 * 1024)
    # v5e / v6e: single TensorCore, big VMEM -> fat single-step tiles
    return dict(min_steps=1, target_rows=1024,
                vmem_limit=96 * 1024 * 1024,
                budget=80 * 1024 * 1024)


def _choose_batch_tile(B, S, D, Dp, d_pad, io_bytes, cd_bytes,
                       target_rows, min_steps, budget, weight_bufs):
    """Largest divisor bt of B whose estimated per-step VMEM footprint fits the
    budget, with bt*S near target_rows, keeping >= min_steps grid steps when
    the batch allows it."""
    w_bytes = weight_bufs * (3 * D * Dp + Dp * D) * cd_bytes

    def step_bytes(bt):
        io = 2 * 3 * bt * S * D * io_bytes + 2 * bt * S * D * io_bytes  # dbl-buf I/O
        proj = 3 * bt * S * Dp * 4                                      # q_/k_/v_ f32
        head = 2 * bt * S * S * 4 + 3 * bt * S * d_pad * 4              # scores/exp/head
        acc = bt * S * D * 4
        return io + proj + head + acc + w_bytes

    best = 1
    for bt in range(1, B + 1):
        if B % bt:
            continue
        if bt * S > max(target_rows, S):
            continue
        if min_steps > 1 and B >= min_steps and B // bt < min_steps:
            continue
        if step_bytes(bt) > budget:
            continue
        best = bt
    return best


def _prep_weights(params, h, d_k, d_pad, D, cd):
    """Transpose PyTorch (out,in) weights once, fold the attention scale into
    w_q, zero-pad each head to d_pad lanes, cast MXU operands to cd."""
    wq, wk, bk, wv, bv, wo, bo = params
    scale = 1.0 / math.sqrt(d_k)
    wq_t = wq.T * scale            # (D, h*d_k)
    wk_t = wk.T
    wv_t = wv.T
    wo_t = wo.T                    # (h*d_k, D)

    Dp = h * d_pad
    if d_pad != d_k:
        pad = d_pad - d_k

        def pad_cols(w):           # (D, h*d_k) -> (D, h*d_pad)
            return jnp.pad(w.reshape(D, h, d_k),
                           ((0, 0), (0, 0), (0, pad))).reshape(D, Dp)

        def pad_rows(w):           # (h*d_k, D) -> (h*d_pad, D)
            return jnp.pad(w.reshape(h, d_k, D),
                           ((0, 0), (0, pad), (0, 0))).reshape(Dp, D)

        def pad_bias(b):           # (h*d_k,) -> (h*d_pad,)
            return jnp.pad(b.reshape(h, d_k), ((0, 0), (0, pad))).reshape(Dp)

        wq_t, wk_t, wv_t = pad_cols(wq_t), pad_cols(wk_t), pad_cols(wv_t)
        wo_t = pad_rows(wo_t)
        bk, bv = pad_bias(bk), pad_bias(bv)

    return (wq_t.astype(cd), wk_t.astype(cd),
            bk.reshape(1, Dp).astype(jnp.float32),
            wv_t.astype(cd),
            bv.reshape(1, Dp).astype(jnp.float32),
            wo_t.astype(cd),
            bo.reshape(1, D).astype(jnp.float32))


# ----------------------------------------------------------------------------
# Public entry point
# ----------------------------------------------------------------------------
def multihead_attention(q, k, v, params, h, *, compute_dtype=jnp.bfloat16):
    B, S, D = q.shape
    assert D % h == 0, "d_model is not divisible by h"
    d_k = D // h
    d_pad = d_k if d_k % 128 == 0 else ((d_k + 127) // 128) * 128
    Dp = h * d_pad
    cd = compute_dtype

    wq_t, wk_t, bk_r, wv_t, bv_r, wo_t, bo_r = _prep_weights(
        params, h, d_k, d_pad, D, cd)

    cfg = _chip_budget()
    bt = _choose_batch_tile(
        B, S, D, Dp, d_pad,
        io_bytes=jnp.dtype(q.dtype).itemsize,
        cd_bytes=jnp.dtype(cd).itemsize,
        target_rows=cfg["target_rows"], min_steps=cfg["min_steps"],
        budget=cfg["budget"], weight_bufs=1)
    grid = (B // bt,)

    kern = functools.partial(mha_kernel, h=h, d_pad=d_pad, compute_dtype=cd)
    args = (q, k, v, wq_t, wk_t, bk_r, wv_t, bv_r, wo_t, bo_r)

    def build(single_buffer_weights):
        batch_spec = pl.BlockSpec((bt, S, D), lambda b: (b, 0, 0))

        def const_spec(shape):
            # Constant block index: DMA is elided; single-buffer to save VMEM.
            if single_buffer_weights:
                return pl.BlockSpec(shape, lambda b: (0, 0),
                                    pipeline_mode=pl.Buffered(1))
            return pl.BlockSpec(shape, lambda b: (0, 0))

        return pl.pallas_call(
            kern,
            out_shape=jax.ShapeDtypeStruct((B, S, D), q.dtype),
            grid=grid,
            in_specs=[
                batch_spec, batch_spec, batch_spec,     # q, k, v (cast in-kernel)
                const_spec((D, Dp)),                    # w_q.T (scaled, padded)
                const_spec((D, Dp)), const_spec((1, Dp)),  # w_k.T, b_k
                const_spec((D, Dp)), const_spec((1, Dp)),  # w_v.T, b_v
                const_spec((Dp, D)), const_spec((1, D)),   # w_o.T, b_o
            ],
            out_specs=batch_spec,
            compiler_params=pltpu.CompilerParams(
                dimension_semantics=("parallel",),
                vmem_limit_bytes=cfg["vmem_limit"]),
        )

    try:
        return build(single_buffer_weights=True)(*args)
    except Exception:
        # pipeline_mode=pl.Buffered(1) unsupported on this build: fall back to
        # default double-buffered weight blocks (same numerics).
        return build(single_buffer_weights=False)(*args)


# ----------------------------------------------------------------------------
# Pure-JAX reference (mirrors the PyTorch forward, eval / no dropout)
# ----------------------------------------------------------------------------
def reference_mha(q, k, v, params, h):
    wq, wk, bk, wv, bv, wo, bo = params
    B, S, D = q.shape
    d_k = D // h
    q_ = q @ wq.T
    k_ = k @ wk.T + bk
    v_ = v @ wv.T + bv
    qc = q_.reshape(B, S, h, d_k).transpose(0, 2, 1, 3)
    kc = k_.reshape(B, S, h, d_k).transpose(0, 2, 1, 3)
    vc = v_.reshape(B, S, h, d_k).transpose(0, 2, 1, 3)
    scores = jnp.einsum("bhqd,bhkd->bhqk", qc, kc) / math.sqrt(d_k)
    attn = jax.nn.softmax(scores, axis=-1)
    x = jnp.einsum("bhqk,bhkd->bhqd", attn, vc)
    x = x.transpose(0, 2, 1, 3).reshape(B, S, D)
    return x @ wo.T + bo


# ----------------------------------------------------------------------------
# Self-test
# ----------------------------------------------------------------------------
if __name__ == "__main__":
    def run_case(key, B, S, d_model, h):
        ks = jax.random.split(key, 10)
        q = jax.random.normal(ks[0], (B, S, d_model), jnp.float32)
        k = jax.random.normal(ks[1], (B, S, d_model), jnp.float32)
        v = jax.random.normal(ks[2], (B, S, d_model), jnp.float32)
        s = 0.1
        params = (
            jax.random.normal(ks[3], (d_model, d_model), jnp.float32) * s,  # w_q
            jax.random.normal(ks[4], (d_model, d_model), jnp.float32) * s,  # w_k
            jax.random.normal(ks[5], (d_model,), jnp.float32) * s,          # b_k
            jax.random.normal(ks[6], (d_model, d_model), jnp.float32) * s,  # w_v
            jax.random.normal(ks[7], (d_model,), jnp.float32) * s,          # b_v
            jax.random.normal(ks[8], (d_model, d_model), jnp.float32) * s,  # w_o
            jax.random.normal(ks[9], (d_model,), jnp.float32) * s,          # b_o
        )
        ref = reference_mha(q, k, v, params, h)

        # Exact-precision path: tight check against the f32 reference.
        out_f32 = jax.block_until_ready(
            multihead_attention(q, k, v, params, h, compute_dtype=jnp.float32))
        assert out_f32.shape == (B, S, d_model)
        assert jnp.allclose(out_f32, ref, rtol=1e-4, atol=1e-4), \
            f"f32 mismatch (B={B}, S={S}, D={d_model}, h={h})"

        # Default bf16-MXU path: loose relative-error check.
        out_bf16 = jax.block_until_ready(multihead_attention(q, k, v, params, h))
        rel = jnp.linalg.norm(out_bf16 - ref) / jnp.linalg.norm(ref)
        assert rel < 2e-2, f"bf16 rel err {float(rel):.4g} too large"

    root = jax.random.PRNGKey(0)
    k1, k2 = jax.random.split(root)
    # d_k < 128  -> per-head zero-padded lane-aligned path (module's toy shape)
    run_case(k1, B=2, S=8, d_model=32, h=4)
    # d_k == 128 -> native lane-aligned head-slice path
    run_case(k2, B=2, S=16, d_model=256, h=2)

    print("KERNEL_OK")
</pallas_src>

<mosaic_0001>
module attributes {stable_mosaic.version = 11 : i64} {
  func.func @mha_kernel(%arg0: i32, %arg1: memref<2x8x32xf32, #tpu.memory_space<vmem>>, %arg2: memref<2x8x32xf32, #tpu.memory_space<vmem>>, %arg3: memref<2x8x32xf32, #tpu.memory_space<vmem>>, %arg4: memref<32x512xf32, #tpu.memory_space<vmem>>, %arg5: memref<32x512xf32, #tpu.memory_space<vmem>>, %arg6: memref<1x512xf32, #tpu.memory_space<vmem>>, %arg7: memref<32x512xf32, #tpu.memory_space<vmem>>, %arg8: memref<1x512xf32, #tpu.memory_space<vmem>>, %arg9: memref<512x32xf32, #tpu.memory_space<vmem>>, %arg10: memref<1x32xf32, #tpu.memory_space<vmem>>, %arg11: memref<2x8x32xf32, #tpu.memory_space<vmem>>) attributes {dimension_semantics = [#tpu.dimension_semantics<parallel>], iteration_bounds = array<i64: 1>, scalar_prefetch = 0 : i64, scratch_operands = 0 : i64, tpu.core_type = #tpu.core_type<tc>, window_params = [{transform_indices = @transform_0, window_bounds = array<i64: 2, 8, 32>}, {transform_indices = @transform_1, window_bounds = array<i64: 2, 8, 32>}, {transform_indices = @transform_2, window_bounds = array<i64: 2, 8, 32>}, {pipeline_mode = #tpu.pipeline_mode<synchronous>, transform_indices = @transform_3, window_bounds = array<i64: 32, 512>}, {pipeline_mode = #tpu.pipeline_mode<synchronous>, transform_indices = @transform_4, window_bounds = array<i64: 32, 512>}, {pipeline_mode = #tpu.pipeline_mode<synchronous>, transform_indices = @transform_5, window_bounds = array<i64: 1, 512>}, {pipeline_mode = #tpu.pipeline_mode<synchronous>, transform_indices = @transform_6, window_bounds = array<i64: 32, 512>}, {pipeline_mode = #tpu.pipeline_mode<synchronous>, transform_indices = @transform_7, window_bounds = array<i64: 1, 512>}, {pipeline_mode = #tpu.pipeline_mode<synchronous>, transform_indices = @transform_8, window_bounds = array<i64: 512, 32>}, {pipeline_mode = #tpu.pipeline_mode<synchronous>, transform_indices = @transform_9, window_bounds = array<i64: 1, 32>}, {transform_indices = @transform_10, window_bounds = array<i64: 2, 8, 32>}]} {
    %c0 = arith.constant 0 : index
    %c0_0 = arith.constant 0 : index
    %c0_1 = arith.constant 0 : index
    %0 = vector.load %arg1[%c0, %c0_0, %c0_1] : memref<2x8x32xf32, #tpu.memory_space<vmem>>, vector<2x8x32xf32>
    %c0_2 = arith.constant 0 : index
    %c0_3 = arith.constant 0 : index
    %1 = vector.load %arg4[%c0_2, %c0_3] : memref<32x512xf32, #tpu.memory_space<vmem>>, vector<32x512xf32>
    %cst = arith.constant dense<0.000000e+00> : vector<2x8x512xf32>
    %2 = tpu.matmul %0, %1, %cst {dimension_numbers = #tpu.dot_dimension_numbers<[2], [0], [0, 1], [1], [0, 0, 0, 1, 1, 1], [], []>} : vector<2x8x32xf32>, vector<32x512xf32>, vector<2x8x512xf32> -> vector<2x8x512xf32>
    %c0_4 = arith.constant 0 : index
    %c0_5 = arith.constant 0 : index
    %c0_6 = arith.constant 0 : index
    %3 = vector.load %arg2[%c0_4, %c0_5, %c0_6] : memref<2x8x32xf32, #tpu.memory_space<vmem>>, vector<2x8x32xf32>
    %c0_7 = arith.constant 0 : index
    %c0_8 = arith.constant 0 : index
    %4 = vector.load %arg5[%c0_7, %c0_8] : memref<32x512xf32, #tpu.memory_space<vmem>>, vector<32x512xf32>
    %cst_9 = arith.constant dense<0.000000e+00> : vector<2x8x512xf32>
    %5 = tpu.matmul %3, %4, %cst_9 {dimension_numbers = #tpu.dot_dimension_numbers<[2], [0], [0, 1], [1], [0, 0, 0, 1, 1, 1], [], []>} : vector<2x8x32xf32>, vector<32x512xf32>, vector<2x8x512xf32> -> vector<2x8x512xf32>
    %c0_10 = arith.constant 0 : index
    %c0_11 = arith.constant 0 : index
    %6 = vector.load %arg6[%c0_10, %c0_11] : memref<1x512xf32, #tpu.memory_space<vmem>>, vector<1x512xf32>
    %7 = vector.shape_cast %6 : vector<1x512xf32> to vector<1x1x512xf32>
    %8 = vector.broadcast %7 : vector<1x1x512xf32> to vector<2x8x512xf32>
    %9 = arith.addf %5, %8 : vector<2x8x512xf32>
    %c0_12 = arith.constant 0 : index
    %c0_13 = arith.constant 0 : index
    %c0_14 = arith.constant 0 : index
    %10 = vector.load %arg3[%c0_12, %c0_13, %c0_14] : memref<2x8x32xf32, #tpu.memory_space<vmem>>, vector<2x8x32xf32>
    %c0_15 = arith.constant 0 : index
    %c0_16 = arith.constant 0 : index
    %11 = vector.load %arg7[%c0_15, %c0_16] : memref<32x512xf32, #tpu.memory_space<vmem>>, vector<32x512xf32>
    %cst_17 = arith.constant dense<0.000000e+00> : vector<2x8x512xf32>
    %12 = tpu.matmul %10, %11, %cst_17 {dimension_numbers = #tpu.dot_dimension_numbers<[2], [0], [0, 1], [1], [0, 0, 0, 1, 1, 1], [], []>} : vector<2x8x32xf32>, vector<32x512xf32>, vector<2x8x512xf32> -> vector<2x8x512xf32>
    %c0_18 = arith.constant 0 : index
    %c0_19 = arith.constant 0 : index
    %13 = vector.load %arg8[%c0_18, %c0_19] : memref<1x512xf32, #tpu.memory_space<vmem>>, vector<1x512xf32>
    %14 = vector.shape_cast %13 : vector<1x512xf32> to vector<1x1x512xf32>
    %15 = vector.broadcast %14 : vector<1x1x512xf32> to vector<2x8x512xf32>
    %16 = arith.addf %12, %15 : vector<2x8x512xf32>
    %cst_20 = arith.constant 0.000000e+00 : f32
    %17 = vector.broadcast %cst_20 : f32 to vector<2x8x32xf32>
    %18 = vector.extract_strided_slice %2 {offsets = [0, 0, 0], sizes = [2, 8, 128], strides = [1, 1, 1]} : vector<2x8x512xf32> to vector<2x8x128xf32>
    %19 = vector.extract_strided_slice %9 {offsets = [0, 0, 0], sizes = [2, 8, 128], strides = [1, 1, 1]} : vector<2x8x512xf32> to vector<2x8x128xf32>
    %20 = vector.extract_strided_slice %16 {offsets = [0, 0, 0], sizes = [2, 8, 128], strides = [1, 1, 1]} : vector<2x8x512xf32> to vector<2x8x128xf32>
    %cst_21 = arith.constant dense<0.000000e+00> : vector<2x8x8xf32>
    %21 = tpu.matmul %18, %19, %cst_21 {dimension_numbers = #tpu.dot_dimension_numbers<[2], [2], [1], [1], [0, 0, 0, 1, 1, 1], [0], [0]>} : vector<2x8x128xf32>, vector<2x8x128xf32>, vector<2x8x8xf32> -> vector<2x8x8xf32>
    %cst_22 = arith.constant dense<0xFF800000> : vector<2x8xf32>
    %22 = vector.multi_reduction <maximumf>, %21, %cst_22 [2] : vector<2x8x8xf32> to vector<2x8xf32>
    %23 = vector.shape_cast %22 : vector<2x8xf32> to vector<2x8x1xf32>
    %24 = vector.broadcast %23 : vector<2x8x1xf32> to vector<2x8x8xf32>
    %25 = arith.subf %21, %24 : vector<2x8x8xf32>
    %26 = math.exp %25 : vector<2x8x8xf32>
    %cst_23 = arith.constant dense<0.000000e+00> : vector<2x8xf32>
    %27 = vector.multi_reduction <add>, %26, %cst_23 [2] : vector<2x8x8xf32> to vector<2x8xf32>
    %28 = vector.shape_cast %27 : vector<2x8xf32> to vector<2x8x1xf32>
    %cst_24 = arith.constant dense<0.000000e+00> : vector<2x8x128xf32>
    %29 = tpu.matmul %26, %20, %cst_24 {dimension_numbers = #tpu.dot_dimension_numbers<[2], [1], [1], [2], [0, 0, 0, 1, 1, 2], [0], [0]>} : vector<2x8x8xf32>, vector<2x8x128xf32>, vector<2x8x128xf32> -> vector<2x8x128xf32>
    %30 = tpu.reciprocal %28 : vector<2x8x1xf32> -> vector<2x8x1xf32>
    %31 = vector.broadcast %30 : vector<2x8x1xf32> to vector<2x8x128xf32>
    %32 = arith.mulf %29, %31 : vector<2x8x128xf32>
    %c0_25 = arith.constant 0 : index
    %c0_26 = arith.constant 0 : index
    %33 = vector.load %arg9[%c0_25, %c0_26] : memref<512x32xf32, #tpu.memory_space<vmem>>, vector<128x32xf32>
    %cst_27 = arith.constant dense<0.000000e+00> : vector<2x8x32xf32>
    %34 = tpu.matmul %32, %33, %cst_27 {dimension_numbers = #tpu.dot_dimension_numbers<[2], [0], [0, 1], [1], [0, 0, 0, 1, 1, 1], [], []>} : vector<2x8x128xf32>, vector<128x32xf32>, vector<2x8x32xf32> -> vector<2x8x32xf32>
    %35 = arith.addf %17, %34 : vector<2x8x32xf32>
    %36 = vector.extract_strided_slice %2 {offsets = [0, 0, 128], sizes = [2, 8, 128], strides = [1, 1, 1]} : vector<2x8x512xf32> to vector<2x8x128xf32>
    %37 = vector.extract_strided_slice %9 {offsets = [0, 0, 128], sizes = [2, 8, 128], strides = [1, 1, 1]} : vector<2x8x512xf32> to vector<2x8x128xf32>
    %38 = vector.extract_strided_slice %16 {offsets = [0, 0, 128], sizes = [2, 8, 128], strides = [1, 1, 1]} : vector<2x8x512xf32> to vector<2x8x128xf32>
    %cst_28 = arith.constant dense<0.000000e+00> : vector<2x8x8xf32>
    %39 = tpu.matmul %36, %37, %cst_28 {dimension_numbers = #tpu.dot_dimension_numbers<[2], [2], [1], [1], [0, 0, 0, 1, 1, 1], [0], [0]>} : vector<2x8x128xf32>, vector<2x8x128xf32>, vector<2x8x8xf32> -> vector<2x8x8xf32>
    %cst_29 = arith.constant dense<0xFF800000> : vector<2x8xf32>
    %40 = vector.multi_reduction <maximumf>, %39, %cst_29 [2] : vector<2x8x8xf32> to vector<2x8xf32>
    %41 = vector.shape_cast %40 : vector<2x8xf32> to vector<2x8x1xf32>
    %42 = vector.broadcast %41 : vector<2x8x1xf32> to vector<2x8x8xf32>
    %43 = arith.subf %39, %42 : vector<2x8x8xf32>
    %44 = math.exp %43 : vector<2x8x8xf32>
    %cst_30 = arith.constant dense<0.000000e+00> : vector<2x8xf32>
    %45 = vector.multi_reduction <add>, %44, %cst_30 [2] : vector<2x8x8xf32> to vector<2x8xf32>
    %46 = vector.shape_cast %45 : vector<2x8xf32> to vector<2x8x1xf32>
    %cst_31 = arith.constant dense<0.000000e+00> : vector<2x8x128xf32>
    %47 = tpu.matmul %44, %38, %cst_31 {dimension_numbers = #tpu.dot_dimension_numbers<[2], [1], [1], [2], [0, 0, 0, 1, 1, 2], [0], [0]>} : vector<2x8x8xf32>, vector<2x8x128xf32>, vector<2x8x128xf32> -> vector<2x8x128xf32>
    %48 = tpu.reciprocal %46 : vector<2x8x1xf32> -> vector<2x8x1xf32>
    %49 = vector.broadcast %48 : vector<2x8x1xf32> to vector<2x8x128xf32>
    %50 = arith.mulf %47, %49 : vector<2x8x128xf32>
    %c128 = arith.constant 128 : index
    %c0_32 = arith.constant 0 : index
    %51 = vector.load %arg9[%c128, %c0_32] : memref<512x32xf32, #tpu.memory_space<vmem>>, vector<128x32xf32>
    %cst_33 = arith.constant dense<0.000000e+00> : vector<2x8x32xf32>
    %52 = tpu.matmul %50, %51, %cst_33 {dimension_numbers = #tpu.dot_dimension_numbers<[2], [0], [0, 1], [1], [0, 0, 0, 1, 1, 1], [], []>} : vector<2x8x128xf32>, vector<128x32xf32>, vector<2x8x32xf32> -> vector<2x8x32xf32>
    %53 = arith.addf %35, %52 : vector<2x8x32xf32>
    %54 = vector.extract_strided_slice %2 {offsets = [0, 0, 256], sizes = [2, 8, 128], strides = [1, 1, 1]} : vector<2x8x512xf32> to vector<2x8x128xf32>
    %55 = vector.extract_strided_slice %9 {offsets = [0, 0, 256], sizes = [2, 8, 128], strides = [1, 1, 1]} : vector<2x8x512xf32> to vector<2x8x128xf32>
    %56 = vector.extract_strided_slice %16 {offsets = [0, 0, 256], sizes = [2, 8, 128], strides = [1, 1, 1]} : vector<2x8x512xf32> to vector<2x8x128xf32>
    %cst_34 = arith.constant dense<0.000000e+00> : vector<2x8x8xf32>
    %57 = tpu.matmul %54, %55, %cst_34 {dimension_numbers = #tpu.dot_dimension_numbers<[2], [2], [1], [1], [0, 0, 0, 1, 1, 1], [0], [0]>} : vector<2x8x128xf32>, vector<2x8x128xf32>, vector<2x8x8xf32> -> vector<2x8x8xf32>
    %cst_35 = arith.constant dense<0xFF800000> : vector<2x8xf32>
    %58 = vector.multi_reduction <maximumf>, %57, %cst_35 [2] : vector<2x8x8xf32> to vector<2x8xf32>
    %59 = vector.shape_cast %58 : vector<2x8xf32> to vector<2x8x1xf32>
    %60 = vector.broadcast %59 : vector<2x8x1xf32> to vector<2x8x8xf32>
    %61 = arith.subf %57, %60 : vector<2x8x8xf32>
    %62 = math.exp %61 : vector<2x8x8xf32>
    %cst_36 = arith.constant dense<0.000000e+00> : vector<2x8xf32>
    %63 = vector.multi_reduction <add>, %62, %cst_36 [2] : vector<2x8x8xf32> to vector<2x8xf32>
    %64 = vector.shape_cast %63 : vector<2x8xf32> to vector<2x8x1xf32>
    %cst_37 = arith.constant dense<0.000000e+00> : vector<2x8x128xf32>
    %65 = tpu.matmul %62, %56, %cst_37 {dimension_numbers = #tpu.dot_dimension_numbers<[2], [1], [1], [2], [0, 0, 0, 1, 1, 2], [0], [0]>} : vector<2x8x8xf32>, vector<2x8x128xf32>, vector<2x8x128xf32> -> vector<2x8x128xf32>
    %66 = tpu.reciprocal %64 : vector<2x8x1xf32> -> vector<2x8x1xf32>
    %67 = vector.broadcast %66 : vector<2x8x1xf32> to vector<2x8x128xf32>
    %68 = arith.mulf %65, %67 : vector<2x8x128xf32>
    %c256 = arith.constant 256 : index
    %c0_38 = arith.constant 0 : index
    %69 = vector.load %arg9[%c256, %c0_38] : memref<512x32xf32, #tpu.memory_space<vmem>>, vector<128x32xf32>
    %cst_39 = arith.constant dense<0.000000e+00> : vector<2x8x32xf32>
    %70 = tpu.matmul %68, %69, %cst_39 {dimension_numbers = #tpu.dot_dimension_numbers<[2], [0], [0, 1], [1], [0, 0, 0, 1, 1, 1], [], []>} : vector<2x8x128xf32>, vector<128x32xf32>, vector<2x8x32xf32> -> vector<2x8x32xf32>
    %71 = arith.addf %53, %70 : vector<2x8x32xf32>
    %72 = vector.extract_strided_slice %2 {offsets = [0, 0, 384], sizes = [2, 8, 128], strides = [1, 1, 1]} : vector<2x8x512xf32> to vector<2x8x128xf32>
    %73 = vector.extract_strided_slice %9 {offsets = [0, 0, 384], sizes = [2, 8, 128], strides = [1, 1, 1]} : vector<2x8x512xf32> to vector<2x8x128xf32>
    %74 = vector.extract_strided_slice %16 {offsets = [0, 0, 384], sizes = [2, 8, 128], strides = [1, 1, 1]} : vector<2x8x512xf32> to vector<2x8x128xf32>
    %cst_40 = arith.constant dense<0.000000e+00> : vector<2x8x8xf32>
    %75 = tpu.matmul %72, %73, %cst_40 {dimension_numbers = #tpu.dot_dimension_numbers<[2], [2], [1], [1], [0, 0, 0, 1, 1, 1], [0], [0]>} : vector<2x8x128xf32>, vector<2x8x128xf32>, vector<2x8x8xf32> -> vector<2x8x8xf32>
    %cst_41 = arith.constant dense<0xFF800000> : vector<2x8xf32>
    %76 = vector.multi_reduction <maximumf>, %75, %cst_41 [2] : vector<2x8x8xf32> to vector<2x8xf32>
    %77 = vector.shape_cast %76 : vector<2x8xf32> to vector<2x8x1xf32>
    %78 = vector.broadcast %77 : vector<2x8x1xf32> to vector<2x8x8xf32>
    %79 = arith.subf %75, %78 : vector<2x8x8xf32>
    %80 = math.exp %79 : vector<2x8x8xf32>
    %cst_42 = arith.constant dense<0.000000e+00> : vector<2x8xf32>
    %81 = vector.multi_reduction <add>, %80, %cst_42 [2] : vector<2x8x8xf32> to vector<2x8xf32>
    %82 = vector.shape_cast %81 : vector<2x8xf32> to vector<2x8x1xf32>
    %cst_43 = arith.constant dense<0.000000e+00> : vector<2x8x128xf32>
    %83 = tpu.matmul %80, %74, %cst_43 {dimension_numbers = #tpu.dot_dimension_numbers<[2], [1], [1], [2], [0, 0, 0, 1, 1, 2], [0], [0]>} : vector<2x8x8xf32>, vector<2x8x128xf32>, vector<2x8x128xf32> -> vector<2x8x128xf32>
    %84 = tpu.reciprocal %82 : vector<2x8x1xf32> -> vector<2x8x1xf32>
    %85 = vector.broadcast %84 : vector<2x8x1xf32> to vector<2x8x128xf32>
    %86 = arith.mulf %83, %85 : vector<2x8x128xf32>
    %c384 = arith.constant 384 : index
    %c0_44 = arith.constant 0 : index
    %87 = vector.load %arg9[%c384, %c0_44] : memref<512x32xf32, #tpu.memory_space<vmem>>, vector<128x32xf32>
    %cst_45 = arith.constant dense<0.000000e+00> : vector<2x8x32xf32>
    %88 = tpu.matmul %86, %87, %cst_45 {dimension_numbers = #tpu.dot_dimension_numbers<[2], [0], [0, 1], [1], [0, 0, 0, 1, 1, 1], [], []>} : vector<2x8x128xf32>, vector<128x32xf32>, vector<2x8x32xf32> -> vector<2x8x32xf32>
    %89 = arith.addf %71, %88 : vector<2x8x32xf32>
    %c0_46 = arith.constant 0 : index
    %c0_47 = arith.constant 0 : index
    %90 = vector.load %arg10[%c0_46, %c0_47] : memref<1x32xf32, #tpu.memory_space<vmem>>, vector<1x32xf32>
    %91 = vector.shape_cast %90 : vector<1x32xf32> to vector<1x1x32xf32>
    %92 = vector.broadcast %91 : vector<1x1x32xf32> to vector<2x8x32xf32>
    %93 = arith.addf %89, %92 : vector<2x8x32xf32>
    %c0_48 = arith.constant 0 : index
    %c0_49 = arith.constant 0 : index
    %c0_50 = arith.constant 0 : index
    %94 = vector.load %arg11[%c0_48, %c0_49, %c0_50] : memref<2x8x32xf32, #tpu.memory_space<vmem>>, vector<2x8x32xf32>
    tpu.vector_store %arg11[%c0_48, %c0_49, %c0_50], %93 {strides = array<i32>} : memref<2x8x32xf32, #tpu.memory_space<vmem>>, vector<2x8x32xf32>,
    return
  }
  func.func @transform_0(%arg0: i32) -> (i32, i32, i32) {
    %c0_i32 = arith.constant 0 : i32
    %c0_i32_0 = arith.constant 0 : i32
    %c0_i32_1 = arith.constant 0 : i32
    return %arg0, %c0_i32, %c0_i32_0 : i32, i32, i32
  }
  func.func @transform_1(%arg0: i32) -> (i32, i32, i32) {
    %c0_i32 = arith.constant 0 : i32
    %c0_i32_0 = arith.constant 0 : i32
    %c0_i32_1 = arith.constant 0 : i32
    return %arg0, %c0_i32, %c0_i32_0 : i32, i32, i32
  }
  func.func @transform_2(%arg0: i32) -> (i32, i32, i32) {
    %c0_i32 = arith.constant 0 : i32
    %c0_i32_0 = arith.constant 0 : i32
    %c0_i32_1 = arith.constant 0 : i32
    return %arg0, %c0_i32, %c0_i32_0 : i32, i32, i32
  }
  func.func @transform_3(%arg0: i32) -> (i32, i32) {
    %c0_i32 = arith.constant 0 : i32
    %c0_i32_0 = arith.constant 0 : i32
    %c0_i32_1 = arith.constant 0 : i32
    return %c0_i32, %c0_i32_0 : i32, i32
  }
  func.func @transform_4(%arg0: i32) -> (i32, i32) {
    %c0_i32 = arith.constant 0 : i32
    %c0_i32_0 = arith.constant 0 : i32
    %c0_i32_1 = arith.constant 0 : i32
    return %c0_i32, %c0_i32_0 : i32, i32
  }
  func.func @transform_5(%arg0: i32) -> (i32, i32) {
    %c0_i32 = arith.constant 0 : i32
    %c0_i32_0 = arith.constant 0 : i32
    %c0_i32_1 = arith.constant 0 : i32
    return %c0_i32, %c0_i32_0 : i32, i32
  }
  func.func @transform_6(%arg0: i32) -> (i32, i32) {
    %c0_i32 = arith.constant 0 : i32
    %c0_i32_0 = arith.constant 0 : i32
    %c0_i32_1 = arith.constant 0 : i32
    return %c0_i32, %c0_i32_0 : i32, i32
  }
  func.func @transform_7(%arg0: i32) -> (i32, i32) {
    %c0_i32 = arith.constant 0 : i32
    %c0_i32_0 = arith.constant 0 : i32
    %c0_i32_1 = arith.constant 0 : i32
    return %c0_i32, %c0_i32_0 : i32, i32
  }
  func.func @transform_8(%arg0: i32) -> (i32, i32) {
    %c0_i32 = arith.constant 0 : i32
    %c0_i32_0 = arith.constant 0 : i32
    %c0_i32_1 = arith.constant 0 : i32
    return %c0_i32, %c0_i32_0 : i32, i32
  }
  func.func @transform_9(%arg0: i32) -> (i32, i32) {
    %c0_i32 = arith.constant 0 : i32
    %c0_i32_0 = arith.constant 0 : i32
    %c0_i32_1 = arith.constant 0 : i32
    return %c0_i32, %c0_i32_0 : i32, i32
  }
  func.func @transform_10(%arg0: i32) -> (i32, i32, i32) {
    %c0_i32 = arith.constant 0 : i32
    %c0_i32_0 = arith.constant 0 : i32
    %c0_i32_1 = arith.constant 0 : i32
    return %arg0, %c0_i32, %c0_i32_0 : i32, i32, i32
  }
}

module attributes {stable_mosaic.version = 11 : i64} {
  func.func @mha_kernel(%arg0: i32, %arg1: memref<2x8x32xf32, #tpu.memory_space<vmem>>, %arg2: memref<2x8x32xf32, #tpu.memory_space<vmem>>, %arg3: memref<2x8x32xf32, #tpu.memory_space<vmem>>, %arg4: memref<32x512xf32, #tpu.memory_space<vmem>>, %arg5: memref<32x512xf32, #tpu.memory_space<vmem>>, %arg6: memref<1x512xf32, #tpu.memory_space<vmem>>, %arg7: memref<32x512xf32, #tpu.memory_space<vmem>>, %arg8: memref<1x512xf32, #tpu.memory_space<vmem>>, %arg9: memref<512x32xf32, #tpu.memory_space<vmem>>, %arg10: memref<1x32xf32, #tpu.memory_space<vmem>>, %arg11: memref<2x8x32xf32, #tpu.memory_space<vmem>>) attributes {dimension_semantics = [#tpu.dimension_semantics<parallel>], iteration_bounds = array<i64: 1>, scalar_prefetch = 0 : i64, scratch_operands = 0 : i64, tpu.core_type = #tpu.core_type<tc>, window_params = [{transform_indices = @transform_0, window_bounds = array<i64: 2, 8, 32>}, {transform_indices = @transform_1, window_bounds = array<i64: 2, 8, 32>}, {transform_indices = @transform_2, window_bounds = array<i64: 2, 8, 32>}, {pipeline_mode = #tpu.pipeline_mode<synchronous>, transform_indices = @transform_3, window_bounds = array<i64: 32, 512>}, {pipeline_mode = #tpu.pipeline_mode<synchronous>, transform_indices = @transform_4, window_bounds = array<i64: 32, 512>}, {pipeline_mode = #tpu.pipeline_mode<synchronous>, transform_indices = @transform_5, window_bounds = array<i64: 1, 512>}, {pipeline_mode = #tpu.pipeline_mode<synchronous>, transform_indices = @transform_6, window_bounds = array<i64: 32, 512>}, {pipeline_mode = #tpu.pipeline_mode<synchronous>, transform_indices = @transform_7, window_bounds = array<i64: 1, 512>}, {pipeline_mode = #tpu.pipeline_mode<synchronous>, transform_indices = @transform_8, window_bounds = array<i64: 512, 32>}, {pipeline_mode = #tpu.pipeline_mode<synchronous>, transform_indices = @transform_9, window_bounds = array<i64: 1, 32>}, {transform_indices = @transform_10, window_bounds = array<i64: 2, 8, 32>}]} {
    %c0 = arith.constant 0 : index
    %c0_0 = arith.constant 0 : index
    %c0_1 = arith.constant 0 : index
    %0 = vector.load %arg1[%c0, %c0_0, %c0_1] : memref<2x8x32xf32, #tpu.memory_space<vmem>>, vector<2x8x32xf32>
    %c0_2 = arith.constant 0 : index
    %c0_3 = arith.constant 0 : index
    %1 = vector.load %arg4[%c0_2, %c0_3] : memref<32x512xf32, #tpu.memory_space<vmem>>, vector<32x512xf32>
    %cst = arith.constant dense<0.000000e+00> : vector<2x8x512xf32>
    %2 = tpu.matmul %0, %1, %cst {dimension_numbers = #tpu.dot_dimension_numbers<[2], [0], [0, 1], [1], [0, 0, 0, 1, 1, 1], [], []>} : vector<2x8x32xf32>, vector<32x512xf32>, vector<2x8x512xf32> -> vector<2x8x512xf32>
    %c0_4 = arith.constant 0 : index
    %c0_5 = arith.constant 0 : index
    %c0_6 = arith.constant 0 : index
    %3 = vector.load %arg2[%c0_4, %c0_5, %c0_6] : memref<2x8x32xf32, #tpu.memory_space<vmem>>, vector<2x8x32xf32>
    %c0_7 = arith.constant 0 : index
    %c0_8 = arith.constant 0 : index
    %4 = vector.load %arg5[%c0_7, %c0_8] : memref<32x512xf32, #tpu.memory_space<vmem>>, vector<32x512xf32>
    %cst_9 = arith.constant dense<0.000000e+00> : vector<2x8x512xf32>
    %5 = tpu.matmul %3, %4, %cst_9 {dimension_numbers = #tpu.dot_dimension_numbers<[2], [0], [0, 1], [1], [0, 0, 0, 1, 1, 1], [], []>} : vector<2x8x32xf32>, vector<32x512xf32>, vector<2x8x512xf32> -> vector<2x8x512xf32>
    %c0_10 = arith.constant 0 : index
    %c0_11 = arith.constant 0 : index
    %6 = vector.load %arg6[%c0_10, %c0_11] : memref<1x512xf32, #tpu.memory_space<vmem>>, vector<1x512xf32>
    %7 = vector.shape_cast %6 : vector<1x512xf32> to vector<1x1x512xf32>
    %8 = vector.broadcast %7 : vector<1x1x512xf32> to vector<2x8x512xf32>
    %9 = arith.addf %5, %8 : vector<2x8x512xf32>
    %c0_12 = arith.constant 0 : index
    %c0_13 = arith.constant 0 : index
    %c0_14 = arith.constant 0 : index
    %10 = vector.load %arg3[%c0_12, %c0_13, %c0_14] : memref<2x8x32xf32, #tpu.memory_space<vmem>>, vector<2x8x32xf32>
    %c0_15 = arith.constant 0 : index
    %c0_16 = arith.constant 0 : index
    %11 = vector.load %arg7[%c0_15, %c0_16] : memref<32x512xf32, #tpu.memory_space<vmem>>, vector<32x512xf32>
    %cst_17 = arith.constant dense<0.000000e+00> : vector<2x8x512xf32>
    %12 = tpu.matmul %10, %11, %cst_17 {dimension_numbers = #tpu.dot_dimension_numbers<[2], [0], [0, 1], [1], [0, 0, 0, 1, 1, 1], [], []>} : vector<2x8x32xf32>, vector<32x512xf32>, vector<2x8x512xf32> -> vector<2x8x512xf32>
    %c0_18 = arith.constant 0 : index
    %c0_19 = arith.constant 0 : index
    %13 = vector.load %arg8[%c0_18, %c0_19] : memref<1x512xf32, #tpu.memory_space<vmem>>, vector<1x512xf32>
    %14 = vector.shape_cast %13 : vector<1x512xf32> to vector<1x1x512xf32>
    %15 = vector.broadcast %14 : vector<1x1x512xf32> to vector<2x8x512xf32>
    %16 = arith.addf %12, %15 : vector<2x8x512xf32>
    %cst_20 = arith.constant 0.000000e+00 : f32
    %17 = vector.broadcast %cst_20 : f32 to vector<2x8x32xf32>
    %18 = vector.extract_strided_slice %2 {offsets = [0, 0, 0], sizes = [2, 8, 128], strides = [1, 1, 1]} : vector<2x8x512xf32> to vector<2x8x128xf32>
    %19 = vector.extract_strided_slice %9 {offsets = [0, 0, 0], sizes = [2, 8, 128], strides = [1, 1, 1]} : vector<2x8x512xf32> to vector<2x8x128xf32>
    %20 = vector.extract_strided_slice %16 {offsets = [0, 0, 0], sizes = [2, 8, 128], strides = [1, 1, 1]} : vector<2x8x512xf32> to vector<2x8x128xf32>
    %cst_21 = arith.constant dense<0.000000e+00> : vector<2x8x8xf32>
    %21 = tpu.matmul %18, %19, %cst_21 {dimension_numbers = #tpu.dot_dimension_numbers<[2], [2], [1], [1], [0, 0, 0, 1, 1, 1], [0], [0]>} : vector<2x8x128xf32>, vector<2x8x128xf32>, vector<2x8x8xf32> -> vector<2x8x8xf32>
    %cst_22 = arith.constant dense<0xFF800000> : vector<2x8xf32>
    %22 = vector.multi_reduction <maximumf>, %21, %cst_22 [2] : vector<2x8x8xf32> to vector<2x8xf32>
    %23 = vector.shape_cast %22 : vector<2x8xf32> to vector<2x8x1xf32>
    %24 = vector.broadcast %23 : vector<2x8x1xf32> to vector<2x8x8xf32>
    %25 = arith.subf %21, %24 : vector<2x8x8xf32>
    %26 = math.exp %25 : vector<2x8x8xf32>
    %cst_23 = arith.constant dense<0.000000e+00> : vector<2x8xf32>
    %27 = vector.multi_reduction <add>, %26, %cst_23 [2] : vector<2x8x8xf32> to vector<2x8xf32>
    %28 = vector.shape_cast %27 : vector<2x8xf32> to vector<2x8x1xf32>
    %cst_24 = arith.constant dense<0.000000e+00> : vector<2x8x128xf32>
    %29 = tpu.matmul %26, %20, %cst_24 {dimension_numbers = #tpu.dot_dimension_numbers<[2], [1], [1], [2], [0, 0, 0, 1, 1, 2], [0], [0]>} : vector<2x8x8xf32>, vector<2x8x128xf32>, vector<2x8x128xf32> -> vector<2x8x128xf32>
    %30 = tpu.reciprocal %28 : vector<2x8x1xf32> -> vector<2x8x1xf32>
    %31 = vector.broadcast %30 : vector<2x8x1xf32> to vector<2x8x128xf32>
    %32 = arith.mulf %29, %31 : vector<2x8x128xf32>
    %c0_25 = arith.constant 0 : index
    %c0_26 = arith.constant 0 : index
    %33 = vector.load %arg9[%c0_25, %c0_26] : memref<512x32xf32, #tpu.memory_space<vmem>>, vector<128x32xf32>
    %cst_27 = arith.constant dense<0.000000e+00> : vector<2x8x32xf32>
    %34 = tpu.matmul %32, %33, %cst_27 {dimension_numbers = #tpu.dot_dimension_numbers<[2], [0], [0, 1], [1], [0, 0, 0, 1, 1, 1], [], []>} : vector<2x8x128xf32>, vector<128x32xf32>, vector<2x8x32xf32> -> vector<2x8x32xf32>
    %35 = arith.addf %17, %34 : vector<2x8x32xf32>
    %36 = vector.extract_strided_slice %2 {offsets = [0, 0, 128], sizes = [2, 8, 128], strides = [1, 1, 1]} : vector<2x8x512xf32> to vector<2x8x128xf32>
    %37 = vector.extract_strided_slice %9 {offsets = [0, 0, 128], sizes = [2, 8, 128], strides = [1, 1, 1]} : vector<2x8x512xf32> to vector<2x8x128xf32>
    %38 = vector.extract_strided_slice %16 {offsets = [0, 0, 128], sizes = [2, 8, 128], strides = [1, 1, 1]} : vector<2x8x512xf32> to vector<2x8x128xf32>
    %cst_28 = arith.constant dense<0.000000e+00> : vector<2x8x8xf32>
    %39 = tpu.matmul %36, %37, %cst_28 {dimension_numbers = #tpu.dot_dimension_numbers<[2], [2], [1], [1], [0, 0, 0, 1, 1, 1], [0], [0]>} : vector<2x8x128xf32>, vector<2x8x128xf32>, vector<2x8x8xf32> -> vector<2x8x8xf32>
    %cst_29 = arith.constant dense<0xFF800000> : vector<2x8xf32>
    %40 = vector.multi_reduction <maximumf>, %39, %cst_29 [2] : vector<2x8x8xf32> to vector<2x8xf32>
    %41 = vector.shape_cast %40 : vector<2x8xf32> to vector<2x8x1xf32>
    %42 = vector.broadcast %41 : vector<2x8x1xf32> to vector<2x8x8xf32>
    %43 = arith.subf %39, %42 : vector<2x8x8xf32>
    %44 = math.exp %43 : vector<2x8x8xf32>
    %cst_30 = arith.constant dense<0.000000e+00> : vector<2x8xf32>
    %45 = vector.multi_reduction <add>, %44, %cst_30 [2] : vector<2x8x8xf32> to vector<2x8xf32>
    %46 = vector.shape_cast %45 : vector<2x8xf32> to vector<2x8x1xf32>
    %cst_31 = arith.constant dense<0.000000e+00> : vector<2x8x128xf32>
    %47 = tpu.matmul %44, %38, %cst_31 {dimension_numbers = #tpu.dot_dimension_numbers<[2], [1], [1], [2], [0, 0, 0, 1, 1, 2], [0], [0]>} : vector<2x8x8xf32>, vector<2x8x128xf32>, vector<2x8x128xf32> -> vector<2x8x128xf32>
    %48 = tpu.reciprocal %46 : vector<2x8x1xf32> -> vector<2x8x1xf32>
    %49 = vector.broadcast %48 : vector<2x8x1xf32> to vector<2x8x128xf32>
    %50 = arith.mulf %47, %49 : vector<2x8x128xf32>
    %c128 = arith.constant 128 : index
    %c0_32 = arith.constant 0 : index
    %51 = vector.load %arg9[%c128, %c0_32] : memref<512x32xf32, #tpu.memory_space<vmem>>, vector<128x32xf32>
    %cst_33 = arith.constant dense<0.000000e+00> : vector<2x8x32xf32>
    %52 = tpu.matmul %50, %51, %cst_33 {dimension_numbers = #tpu.dot_dimension_numbers<[2], [0], [0, 1], [1], [0, 0, 0, 1, 1, 1], [], []>} : vector<2x8x128xf32>, vector<128x32xf32>, vector<2x8x32xf32> -> vector<2x8x32xf32>
    %53 = arith.addf %35, %52 : vector<2x8x32xf32>
    %54 = vector.extract_strided_slice %2 {offsets = [0, 0, 256], sizes = [2, 8, 128], strides = [1, 1, 1]} : vector<2x8x512xf32> to vector<2x8x128xf32>
    %55 = vector.extract_strided_slice %9 {offsets = [0, 0, 256], sizes = [2, 8, 128], strides = [1, 1, 1]} : vector<2x8x512xf32> to vector<2x8x128xf32>
    %56 = vector.extract_strided_slice %16 {offsets = [0, 0, 256], sizes = [2, 8, 128], strides = [1, 1, 1]} : vector<2x8x512xf32> to vector<2x8x128xf32>
    %cst_34 = arith.constant dense<0.000000e+00> : vector<2x8x8xf32>
    %57 = tpu.matmul %54, %55, %cst_34 {dimension_numbers = #tpu.dot_dimension_numbers<[2], [2], [1], [1], [0, 0, 0, 1, 1, 1], [0], [0]>} : vector<2x8x128xf32>, vector<2x8x128xf32>, vector<2x8x8xf32> -> vector<2x8x8xf32>
    %cst_35 = arith.constant dense<0xFF800000> : vector<2x8xf32>
    %58 = vector.multi_reduction <maximumf>, %57, %cst_35 [2] : vector<2x8x8xf32> to vector<2x8xf32>
    %59 = vector.shape_cast %58 : vector<2x8xf32> to vector<2x8x1xf32>
    %60 = vector.broadcast %59 : vector<2x8x1xf32> to vector<2x8x8xf32>
    %61 = arith.subf %57, %60 : vector<2x8x8xf32>
    %62 = math.exp %61 : vector<2x8x8xf32>
    %cst_36 = arith.constant dense<0.000000e+00> : vector<2x8xf32>
    %63 = vector.multi_reduction <add>, %62, %cst_36 [2] : vector<2x8x8xf32> to vector<2x8xf32>
    %64 = vector.shape_cast %63 : vector<2x8xf32> to vector<2x8x1xf32>
    %cst_37 = arith.constant dense<0.000000e+00> : vector<2x8x128xf32>
    %65 = tpu.matmul %62, %56, %cst_37 {dimension_numbers = #tpu.dot_dimension_numbers<[2], [1], [1], [2], [0, 0, 0, 1, 1, 2], [0], [0]>} : vector<2x8x8xf32>, vector<2x8x128xf32>, vector<2x8x128xf32> -> vector<2x8x128xf32>
    %66 = tpu.reciprocal %64 : vector<2x8x1xf32> -> vector<2x8x1xf32>
    %67 = vector.broadcast %66 : vector<2x8x1xf32> to vector<2x8x128xf32>
    %68 = arith.mulf %65, %67 : vector<2x8x128xf32>
    %c256 = arith.constant 256 : index
    %c0_38 = arith.constant 0 : index
    %69 = vector.load %arg9[%c256, %c0_38] : memref<512x32xf32, #tpu.memory_space<vmem>>, vector<128x32xf32>
    %cst_39 = arith.constant dense<0.000000e+00> : vector<2x8x32xf32>
    %70 = tpu.matmul %68, %69, %cst_39 {dimension_numbers = #tpu.dot_dimension_numbers<[2], [0], [0, 1], [1], [0, 0, 0, 1, 1, 1], [], []>} : vector<2x8x128xf32>, vector<128x32xf32>, vector<2x8x32xf32> -> vector<2x8x32xf32>
    %71 = arith.addf %53, %70 : vector<2x8x32xf32>
    %72 = vector.extract_strided_slice %2 {offsets = [0, 0, 384], sizes = [2, 8, 128], strides = [1, 1, 1]} : vector<2x8x512xf32> to vector<2x8x128xf32>
    %73 = vector.extract_strided_slice %9 {offsets = [0, 0, 384], sizes = [2, 8, 128], strides = [1, 1, 1]} : vector<2x8x512xf32> to vector<2x8x128xf32>
    %74 = vector.extract_strided_slice %16 {offsets = [0, 0, 384], sizes = [2, 8, 128], strides = [1, 1, 1]} : vector<2x8x512xf32> to vector<2x8x128xf32>
    %cst_40 = arith.constant dense<0.000000e+00> : vector<2x8x8xf32>
    %75 = tpu.matmul %72, %73, %cst_40 {dimension_numbers = #tpu.dot_dimension_numbers<[2], [2], [1], [1], [0, 0, 0, 1, 1, 1], [0], [0]>} : vector<2x8x128xf32>, vector<2x8x128xf32>, vector<2x8x8xf32> -> vector<2x8x8xf32>
    %cst_41 = arith.constant dense<0xFF800000> : vector<2x8xf32>
    %76 = vector.multi_reduction <maximumf>, %75, %cst_41 [2] : vector<2x8x8xf32> to vector<2x8xf32>
    %77 = vector.shape_cast %76 : vector<2x8xf32> to vector<2x8x1xf32>
    %78 = vector.broadcast %77 : vector<2x8x1xf32> to vector<2x8x8xf32>
    %79 = arith.subf %75, %78 : vector<2x8x8xf32>
    %80 = math.exp %79 : vector<2x8x8xf32>
    %cst_42 = arith.constant dense<0.000000e+00> : vector<2x8xf32>
    %81 = vector.multi_reduction <add>, %80, %cst_42 [2] : vector<2x8x8xf32> to vector<2x8xf32>
    %82 = vector.shape_cast %81 : vector<2x8xf32> to vector<2x8x1xf32>
    %cst_43 = arith.constant dense<0.000000e+00> : vector<2x8x128xf32>
    %83 = tpu.matmul %80, %74, %cst_43 {dimension_numbers = #tpu.dot_dimension_numbers<[2], [1], [1], [2], [0, 0, 0, 1, 1, 2], [0], [0]>} : vector<2x8x8xf32>, vector<2x8x128xf32>, vector<2x8x128xf32> -> vector<2x8x128xf32>
    %84 = tpu.reciprocal %82 : vector<2x8x1xf32> -> vector<2x8x1xf32>
    %85 = vector.broadcast %84 : vector<2x8x1xf32> to vector<2x8x128xf32>
    %86 = arith.mulf %83, %85 : vector<2x8x128xf32>
    %c384 = arith.constant 384 : index
    %c0_44 = arith.constant 0 : index
    %87 = vector.load %arg9[%c384, %c0_44] : memref<512x32xf32, #tpu.memory_space<vmem>>, vector<128x32xf32>
    %cst_45 = arith.constant dense<0.000000e+00> : vector<2x8x32xf32>
    %88 = tpu.matmul %86, %87, %cst_45 {dimension_numbers = #tpu.dot_dimension_numbers<[2], [0], [0, 1], [1], [0, 0, 0, 1, 1, 1], [], []>} : vector<2x8x128xf32>, vector<128x32xf32>, vector<2x8x32xf32> -> vector<2x8x32xf32>
    %89 = arith.addf %71, %88 : vector<2x8x32xf32>
    %c0_46 = arith.constant 0 : index
    %c0_47 = arith.constant 0 : index
    %90 = vector.load %arg10[%c0_46, %c0_47] : memref<1x32xf32, #tpu.memory_space<vmem>>, vector<1x32xf32>
    %91 = vector.shape_cast %90 : vector<1x32xf32> to vector<1x1x32xf32>
    %92 = vector.broadcast %91 : vector<1x1x32xf32> to vector<2x8x32xf32>
    %93 = arith.addf %89, %92 : vector<2x8x32xf32>
    %c0_48 = arith.constant 0 : index
    %c0_49 = arith.constant 0 : index
    %c0_50 = arith.constant 0 : index
    %94 = vector.load %arg11[%c0_48, %c0_49, %c0_50] : memref<2x8x32xf32, #tpu.memory_space<vmem>>, vector<2x8x32xf32>
    tpu.vector_store %arg11[%c0_48, %c0_49, %c0_50], %93 {strides = array<i32>} : memref<2x8x32xf32, #tpu.memory_space<vmem>>, vector<2x8x32xf32>,
    return
  }
  func.func @transform_0(%arg0: i32) -> (i32, i32, i32) {
    %c0_i32 = arith.constant 0 : i32
    %c0_i32_0 = arith.constant 0 : i32
    %c0_i32_1 = arith.constant 0 : i32
    return %arg0, %c0_i32, %c0_i32_0 : i32, i32, i32
  }
  func.func @transform_1(%arg0: i32) -> (i32, i32, i32) {
    %c0_i32 = arith.constant 0 : i32
    %c0_i32_0 = arith.constant 0 : i32
    %c0_i32_1 = arith.constant 0 : i32
    return %arg0, %c0_i32, %c0_i32_0 : i32, i32, i32
  }
  func.func @transform_2(%arg0: i32) -> (i32, i32, i32) {
    %c0_i32 = arith.constant 0 : i32
    %c0_i32_0 = arith.constant 0 : i32
    %c0_i32_1 = arith.constant 0 : i32
    return %arg0, %c0_i32, %c0_i32_0 : i32, i32, i32
  }
  func.func @transform_3(%arg0: i32) -> (i32, i32) {
    %c0_i32 = arith.constant 0 : i32
    %c0_i32_0 = arith.constant 0 : i32
    %c0_i32_1 = arith.constant 0 : i32
    return %c0_i32, %c0_i32_0 : i32, i32
  }
  func.func @transform_4(%arg0: i32) -> (i32, i32) {
    %c0_i32 = arith.constant 0 : i32
    %c0_i32_0 = arith.constant 0 : i32
    %c0_i32_1 = arith.constant 0 : i32
    return %c0_i32, %c0_i32_0 : i32, i32
  }
  func.func @transform_5(%arg0: i32) -> (i32, i32) {
    %c0_i32 = arith.constant 0 : i32
    %c0_i32_0 = arith.constant 0 : i32
    %c0_i32_1 = arith.constant 0 : i32
    return %c0_i32, %c0_i32_0 : i32, i32
  }
  func.func @transform_6(%arg0: i32) -> (i32, i32) {
    %c0_i32 = arith.constant 0 : i32
    %c0_i32_0 = arith.constant 0 : i32
    %c0_i32_1 = arith.constant 0 : i32
    return %c0_i32, %c0_i32_0 : i32, i32
  }
  func.func @transform_7(%arg0: i32) -> (i32, i32) {
    %c0_i32 = arith.constant 0 : i32
    %c0_i32_0 = arith.constant 0 : i32
    %c0_i32_1 = arith.constant 0 : i32
    return %c0_i32, %c0_i32_0 : i32, i32
  }
  func.func @transform_8(%arg0: i32) -> (i32, i32) {
    %c0_i32 = arith.constant 0 : i32
    %c0_i32_0 = arith.constant 0 : i32
    %c0_i32_1 = arith.constant 0 : i32
    return %c0_i32, %c0_i32_0 : i32, i32
  }
  func.func @transform_9(%arg0: i32) -> (i32, i32) {
    %c0_i32 = arith.constant 0 : i32
    %c0_i32_0 = arith.constant 0 : i32
    %c0_i32_1 = arith.constant 0 : i32
    return %c0_i32, %c0_i32_0 : i32, i32
  }
  func.func @transform_10(%arg0: i32) -> (i32, i32, i32) {
    %c0_i32 = arith.constant 0 : i32
    %c0_i32_0 = arith.constant 0 : i32
    %c0_i32_1 = arith.constant 0 : i32
    return %arg0, %c0_i32, %c0_i32_0 : i32, i32, i32
  }
}

</mosaic_0001>

<llo_original>
// kernel: tpu_custom_call.1
$region0: #{tpu_custom_call.1}
  #allocation0 [shape = 'u32[]', space=smem, size = 0x4, offset = 0x4, fixed_abs, tag = 'smem constant byte address 0x4 - core index']
  #allocation1 [shape = 'u32[72,128]{1,0:T(1,128)}', space=vmem, size = 0x9000, scoped, tag = 'internal scratch']
  %s0 = inlined_call_operand.vmem [shape: f32[2,8,32], index: 0, kind: input, shape index: {}]
  %s1 = inlined_call_operand.vmem [shape: f32[2,8,32], index: 1, kind: input, shape index: {}]
  %s2 = inlined_call_operand.vmem [shape: f32[2,8,32], index: 2, kind: input, shape index: {}]
  %s3 = inlined_call_operand.vmem [shape: f32[32,512], index: 3, kind: input, shape index: {}]
  %s4 = inlined_call_operand.vmem [shape: f32[32,512], index: 4, kind: input, shape index: {}]
  %s5 = inlined_call_operand.vmem [shape: f32[1,512], index: 5, kind: input, shape index: {}]
  %s6 = inlined_call_operand.vmem [shape: f32[32,512], index: 6, kind: input, shape index: {}]
  %s7 = inlined_call_operand.vmem [shape: f32[1,512], index: 7, kind: input, shape index: {}]
  %s8 = inlined_call_operand.vmem [shape: f32[512,32], index: 8, kind: input, shape index: {}]
  %s9 = inlined_call_operand.vmem [shape: f32[1,32], index: 9, kind: input, shape index: {}]
  %s10 = inlined_call_operand.hbm [shape: f32[2,8,32], index: 10, kind: output, shape index: {}]
  %s11 = sld [smem:[#allocation0]]
  $region50: #{tpu_custom_call.1} parent=0
    _
  %s13 = ssub.s32 1, %s11
  %s14 = scalar_select 0, %s13, %s11
  $region1: #{tpu_custom_call.1} parent=0
    #allocation2 [shape = 'u8[8192]{0}', space=vmem, size = 0x2000, scoped, tag = 'output window, operand 0, single buffered']
    #allocation3 [shape = 's32[1]{0}', space=sflag, size = 0x4, scoped, tag = 'scoped memory for tpu_custom_call.1']
    %15 = vsyncpa [#allocation3], 0
    // Predicated region
    $region2: #{tpu_custom_call.1} parent=1 // pred_check
      _
    $region3: #{tpu_custom_call.1} parent=1 // pred_check_branch
      %17 = sbr.rel (0) target = $region5
    $region4: #{tpu_custom_call.1} parent=1 // pred_region
      _
    $region5: #{tpu_custom_call.1} parent=1 // pred_fallthru
      _
    // Predicated region
    $region6: #{tpu_custom_call.1} parent=1 // pred_check
      _
    $region7: #{tpu_custom_call.1} parent=1 // pred_check_branch
      %19 = sbr.rel (0) target = $region9
    $region8: #{tpu_custom_call.1} parent=1 // pred_region
      _
    $region9: #{tpu_custom_call.1} parent=1 // pred_fallthru
      _
    // Predicated region
    $region10: #{tpu_custom_call.1} parent=1 // pred_check
      _
    $region11: #{tpu_custom_call.1} parent=1 // pred_check_branch
      %21 = sbr.rel (0) target = $region13
    $region12: #{tpu_custom_call.1} parent=1 // pred_region
      _
    $region13: #{tpu_custom_call.1} parent=1 // pred_fallthru
      _
    // Predicated region
    $region14: #{tpu_custom_call.1} parent=1 // pred_check
      _
    $region15: #{tpu_custom_call.1} parent=1 // pred_check_branch
      %23 = sbr.rel (0) target = $region17
    $region16: #{tpu_custom_call.1} parent=1 // pred_region
      _
    $region17: #{tpu_custom_call.1} parent=1 // pred_fallthru
      _
    // Predicated region
    $region18: #{tpu_custom_call.1} parent=1 // pred_check
      _
    $region19: #{tpu_custom_call.1} parent=1 // pred_check_branch
      %25 = sbr.rel (0) target = $region21
    $region20: #{tpu_custom_call.1} parent=1 // pred_region
      _
    $region21: #{tpu_custom_call.1} parent=1 // pred_fallthru
      _
    // Predicated region
    $region22: #{tpu_custom_call.1} parent=1 // pred_check
      _
    $region23: #{tpu_custom_call.1} parent=1 // pred_check_branch
      %27 = sbr.rel (0) target = $region25
    $region24: #{tpu_custom_call.1} parent=1 // pred_region
      _
    $region25: #{tpu_custom_call.1} parent=1 // pred_fallthru
      _
    // Predicated region
    $region26: #{tpu_custom_call.1} parent=1 // pred_check
      _
    $region27: #{tpu_custom_call.1} parent=1 // pred_check_branch
      %29 = sbr.rel (0) target = $region29
    $region28: #{tpu_custom_call.1} parent=1 // pred_region
      _
    $region29: #{tpu_custom_call.1} parent=1 // pred_fallthru
      _
    // Predicated region
    $region30: #{tpu_custom_call.1} parent=1 // pred_check
      _
    $region31: #{tpu_custom_call.1} parent=1 // pred_check_branch
      %31 = sbr.rel (0) target = $region33
    $region32: #{tpu_custom_call.1} parent=1 // pred_region
      _
    $region33: #{tpu_custom_call.1} parent=1 // pred_fallthru
      _
    // Predicated region
    $region34: #{tpu_custom_call.1} parent=1 // pred_check
      _
    $region35: #{tpu_custom_call.1} parent=1 // pred_check_branch
      %33 = sbr.rel (0) target = $region37
    $region36: #{tpu_custom_call.1} parent=1 // pred_region
      _
    $region37: #{tpu_custom_call.1} parent=1 // pred_fallthru
      _
    // Predicated region
    $region38: #{tpu_custom_call.1} parent=1 // pred_check
      _
    $region39: #{tpu_custom_call.1} parent=1 // pred_check_branch
      %35 = sbr.rel (0) target = $region41
    $region40: #{tpu_custom_call.1} parent=1 // pred_region
      _
    $region41: #{tpu_custom_call.1} parent=1 // pred_fallthru
      _
    %v36 = vld [vmem:[%s0] sm:$0xff]
    %v37 = vld [vmem:[%s0 + $0x8] sm:$0xff]
    %v38 = vld [vmem:[%s3] sm:$0xff]
    %v39 = vld [vmem:[%s3 + $0x8] sm:$0xff]
    %v40 = vld [vmem:[%s3 + $0x10] sm:$0xff]
    %v41 = vld [vmem:[%s3 + $0x18] sm:$0xff]
    %v42 = vld [vmem:[%s3 + $0x20] sm:$0xff]
    %v43 = vld [vmem:[%s3 + $0x28] sm:$0xff]
    %v44 = vld [vmem:[%s3 + $0x30] sm:$0xff]
    %v45 = vld [vmem:[%s3 + $0x38] sm:$0xff]
    %v46 = vld [vmem:[%s3 + $0x40] sm:$0xff]
    %v47 = vld [vmem:[%s3 + $0x48] sm:$0xff]
    %v48 = vld [vmem:[%s3 + $0x50] sm:$0xff]
    %v49 = vld [vmem:[%s3 + $0x58] sm:$0xff]
    %v50 = vld [vmem:[%s3 + $0x60] sm:$0xff]
    %v51 = vld [vmem:[%s3 + $0x68] sm:$0xff]
    %v52 = vld [vmem:[%s3 + $0x70] sm:$0xff]
    %v53 = vld [vmem:[%s3 + $0x78] sm:$0xff]
    %vm54 = vcmask 261120
    %v56 = vsel %vm54, %v36, 0
    %v59 = vsel %vm54, %v37, 0
    %61 = vmatpush.msra.mxu0 0.0
    %62 = vmatpush.msra.mxu0 0.0
    %63 = vmatpush.msra.mxu0 0.0
    %64 = vmatpush.msra.mxu0 0.0
    %65 = vmatpush.msra.mxu0 0.0
    %66 = vmatpush.msra.mxu0 0.0
    %67 = vmatpush.msra.mxu0 0.0
    %68 = vmatpush.msra.mxu0 0.0
    %69 = vmatpush.msra.mxu0 0.0
    %70 = vmatpush.msra.mxu0 0.0
    %71 = vmatpush.msra.mxu0 0.0
    %72 = vmatpush.msra.mxu0 0.0
    %73 = vmatpush.msra.mxu0 %v50
    %74 = vmatpush.msra.mxu0 %v46
    %75 = vmatpush.msra.mxu0 %v42
    %76 = vmatpush.msra.mxu0 %v38
    %77 = vmatmul.f32.gmra.mxu0 %v56
    %v78 = vpop.f32.mrf.mxu0
    %v79 = vadd.f32 0.0, %v78
    %80 = vmatmul.f32.gmra.mxu0 %v59
    %v81 = vpop.f32.mrf.mxu0
    %v82 = vadd.f32 0.0, %v81
    %83 = vdwg.mxu0
    %84 = vmatpush.msra.mxu0 0.0
    %85 = vmatpush.msra.mxu0 0.0
    %86 = vmatpush.msra.mxu0 0.0
    %87 = vmatpush.msra.mxu0 0.0
    %88 = vmatpush.msra.mxu0 0.0
    %89 = vmatpush.msra.mxu0 0.0
    %90 = vmatpush.msra.mxu0 0.0
    %91 = vmatpush.msra.mxu0 0.0
    %92 = vmatpush.msra.mxu0 0.0
    %93 = vmatpush.msra.mxu0 0.0
    %94 = vmatpush.msra.mxu0 0.0
    %95 = vmatpush.msra.mxu0 0.0
    %96 = vmatpush.msra.mxu0 %v51
    %97 = vmatpush.msra.mxu0 %v47
    %98 = vmatpush.msra.mxu0 %v43
    %99 = vmatpush.msra.mxu0 %v39
    %100 = vmatmul.f32.gmra.mxu0 %v56
    %v101 = vpop.f32.mrf.mxu0
    %v102 = vadd.f32 0.0, %v101
    %103 = vmatmul.f32.gmra.mxu0 %v59
    %v104 = vpop.f32.mrf.mxu0
    %v105 = vadd.f32 0.0, %v104
    %106 = vdwg.mxu0
    %107 = vmatpush.msra.mxu0 0.0
    %108 = vmatpush.msra.mxu0 0.0
    %109 = vmatpush.msra.mxu0 0.0
    %110 = vmatpush.msra.mxu0 0.0
    %111 = vmatpush.msra.mxu0 0.0
    %112 = vmatpush.msra.mxu0 0.0
    %113 = vmatpush.msra.mxu0 0.0
    %114 = vmatpush.msra.mxu0 0.0
    %115 = vmatpush.msra.mxu0 0.0
    %116 = vmatpush.msra.mxu0 0.0
    %117 = vmatpush.msra.mxu0 0.0
    %118 = vmatpush.msra.mxu0 0.0
    %119 = vmatpush.msra.mxu0 %v52
    %120 = vmatpush.msra.mxu0 %v48
    %121 = vmatpush.msra.mxu0 %v44
    %122 = vmatpush.msra.mxu0 %v40
    %123 = vmatmul.f32.gmra.mxu0 %v56
    %v124 = vpop.f32.mrf.mxu0
    %v125 = vadd.f32 0.0, %v124
    %126 = vmatmul.f32.gmra.mxu0 %v59
    %v127 = vpop.f32.mrf.mxu0
    %v128 = vadd.f32 0.0, %v127
    %129 = vdwg.mxu0
    %130 = vmatpush.msra.mxu0 0.0
    %131 = vmatpush.msra.mxu0 0.0
    %132 = vmatpush.msra.mxu0 0.0
    %133 = vmatpush.msra.mxu0 0.0
    %134 = vmatpush.msra.mxu0 0.0
    %135 = vmatpush.msra.mxu0 0.0
    %136 = vmatpush.msra.mxu0 0.0
    %137 = vmatpush.msra.mxu0 0.0
    %138 = vmatpush.msra.mxu0 0.0
    %139 = vmatpush.msra.mxu0 0.0
    %140 = vmatpush.msra.mxu0 0.0
    %141 = vmatpush.msra.mxu0 0.0
    %142 = vmatpush.msra.mxu0 %v53
    %143 = vmatpush.msra.mxu0 %v49
    %144 = vmatpush.msra.mxu0 %v45
    %145 = vmatpush.msra.mxu0 %v41
    %146 = vmatmul.f32.gmra.mxu0 %v56
    %v147 = vpop.f32.mrf.mxu0
    %v148 = vadd.f32 0.0, %v147
    %149 = vmatmul.f32.gmra.mxu0 %v59
    %v150 = vpop.f32.mrf.mxu0
    %v151 = vadd.f32 0.0, %v150
    %152 = vdwg.mxu0
    %v153 = vld [vmem:[%s1] sm:$0xff]
    %v154 = vld [vmem:[%s1 + $0x8] sm:$0xff]
    %v155 = vld [vmem:[%s4] sm:$0xff]
    %v156 = vld [vmem:[%s4 + $0x8] sm:$0xff]
    %v157 = vld [vmem:[%s4 + $0x10] sm:$0xff]
    %v158 = vld [vmem:[%s4 + $0x18] sm:$0xff]
    %v159 = vld [vmem:[%s4 + $0x20] sm:$0xff]
    %v160 = vld [vmem:[%s4 + $0x28] sm:$0xff]
    %v161 = vld [vmem:[%s4 + $0x30] sm:$0xff]
    %v162 = vld [vmem:[%s4 + $0x38] sm:$0xff]
    %v163 = vld [vmem:[%s4 + $0x40] sm:$0xff]
    %v164 = vld [vmem:[%s4 + $0x48] sm:$0xff]
    %v165 = vld [vmem:[%s4 + $0x50] sm:$0xff]
    %v166 = vld [vmem:[%s4 + $0x58] sm:$0xff]
    %v167 = vld [vmem:[%s4 + $0x60] sm:$0xff]
    %v168 = vld [vmem:[%s4 + $0x68] sm:$0xff]
    %v169 = vld [vmem:[%s4 + $0x70] sm:$0xff]
    %v170 = vld [vmem:[%s4 + $0x78] sm:$0xff]
    %v171 = vld [vmem:[%s5] sm:$0xf]
    %v173 = vperm.slane %v171, 0
    %v174 = vperm.slane %v171, 1
    %v175 = vperm.slane %v171, 2
    %v176 = vperm.slane %v171, 3
    %v182 = vsel %vm54, %v153, 0
    %v185 = vsel %vm54, %v154, 0
    %187 = vmatpush.msra.mxu0 0.0
    %188 = vmatpush.msra.mxu0 0.0
    %189 = vmatpush.msra.mxu0 0.0
    %190 = vmatpush.msra.mxu0 0.0
    %191 = vmatpush.msra.mxu0 0.0
    %192 = vmatpush.msra.mxu0 0.0
    %193 = vmatpush.msra.mxu0 0.0
    %194 = vmatpush.msra.mxu0 0.0
    %195 = vmatpush.msra.mxu0 0.0
    %196 = vmatpush.msra.mxu0 0.0
    %197 = vmatpush.msra.mxu0 0.0
    %198 = vmatpush.msra.mxu0 0.0
    %199 = vmatpush.msra.mxu0 %v167
    %200 = vmatpush.msra.mxu0 %v163
    %201 = vmatpush.msra.mxu0 %v159
    %202 = vmatpush.msra.mxu0 %v155
    %203 = vmatmul.f32.gmra.mxu0 %v182
    %v204 = vpop.f32.mrf.mxu0
    %v205 = vadd.f32 %v173, %v204
    %206 = vmatmul.f32.gmra.mxu0 %v185
    %v207 = vpop.f32.mrf.mxu0
    %v208 = vadd.f32 %v173, %v207
    %209 = vdwg.mxu0
    %210 = vmatpush.msra.mxu0 0.0
    %211 = vmatpush.msra.mxu0 0.0
    %212 = vmatpush.msra.mxu0 0.0
    %213 = vmatpush.msra.mxu0 0.0
    %214 = vmatpush.msra.mxu0 0.0
    %215 = vmatpush.msra.mxu0 0.0
    %216 = vmatpush.msra.mxu0 0.0
    %217 = vmatpush.msra.mxu0 0.0
    %218 = vmatpush.msra.mxu0 0.0
    %219 = vmatpush.msra.mxu0 0.0
    %220 = vmatpush.msra.mxu0 0.0
    %221 = vmatpush.msra.mxu0 0.0
    %222 = vmatpush.msra.mxu0 %v168
    %223 = vmatpush.msra.mxu0 %v164
    %224 = vmatpush.msra.mxu0 %v160
    %225 = vmatpush.msra.mxu0 %v156
    %226 = vmatmul.f32.gmra.mxu0 %v182
    %v227 = vpop.f32.mrf.mxu0
    %v228 = vadd.f32 %v174, %v227
    %229 = vmatmul.f32.gmra.mxu0 %v185
    %v230 = vpop.f32.mrf.mxu0
    %v231 = vadd.f32 %v174, %v230
    %232 = vdwg.mxu0
    %233 = vmatpush.msra.mxu0 0.0
    %234 = vmatpush.msra.mxu0 0.0
    %235 = vmatpush.msra.mxu0 0.0
    %236 = vmatpush.msra.mxu0 0.0
    %237 = vmatpush.msra.mxu0 0.0
    %238 = vmatpush.msra.mxu0 0.0
    %239 = vmatpush.msra.mxu0 0.0
    %240 = vmatpush.msra.mxu0 0.0
    %241 = vmatpush.msra.mxu0 0.0
    %242 = vmatpush.msra.mxu0 0.0
    %243 = vmatpush.msra.mxu0 0.0
    %244 = vmatpush.msra.mxu0 0.0
    %245 = vmatpush.msra.mxu0 %v169
    %246 = vmatpush.msra.mxu0 %v165
    %247 = vmatpush.msra.mxu0 %v161
    %248 = vmatpush.msra.mxu0 %v157
    %249 = vmatmul.f32.gmra.mxu0 %v182
    %v250 = vpop.f32.mrf.mxu0
    %v251 = vadd.f32 %v175, %v250
    %252 = vmatmul.f32.gmra.mxu0 %v185
    %v253 = vpop.f32.mrf.mxu0
    %v254 = vadd.f32 %v175, %v253
    %255 = vdwg.mxu0
    %256 = vmatpush.msra.mxu0 0.0
    %257 = vmatpush.msra.mxu0 0.0
    %258 = vmatpush.msra.mxu0 0.0
    %259 = vmatpush.msra.mxu0 0.0
    %260 = vmatpush.msra.mxu0 0.0
    %261 = vmatpush.msra.mxu0 0.0
    %262 = vmatpush.msra.mxu0 0.0
    %263 = vmatpush.msra.mxu0 0.0
    %264 = vmatpush.msra.mxu0 0.0
    %265 = vmatpush.msra.mxu0 0.0
    %266 = vmatpush.msra.mxu0 0.0
    %267 = vmatpush.msra.mxu0 0.0
    %268 = vmatpush.msra.mxu0 %v170
    %269 = vmatpush.msra.mxu0 %v166
    %270 = vmatpush.msra.mxu0 %v162
    %271 = vmatpush.msra.mxu0 %v158
    %272 = vmatmul.f32.gmra.mxu0 %v182
    %v273 = vpop.f32.mrf.mxu0
    %v274 = vadd.f32 %v176, %v273
    %275 = vmatmul.f32.gmra.mxu0 %v185
    %v276 = vpop.f32.mrf.mxu0
    %v277 = vadd.f32 %v176, %v276
    %278 = vdwg.mxu0
    %v279 = vld [vmem:[%s2] sm:$0xff]
    %v280 = vld [vmem:[%s2 + $0x8] sm:$0xff]
    %v281 = vld [vmem:[%s6] sm:$0xff]
    %v282 = vld [vmem:[%s6 + $0x8] sm:$0xff]
    %v283 = vld [vmem:[%s6 + $0x10] sm:$0xff]
    %v284 = vld [vmem:[%s6 + $0x18] sm:$0xff]
    %v285 = vld [vmem:[%s6 + $0x20] sm:$0xff]
    %v286 = vld [vmem:[%s6 + $0x28] sm:$0xff]
    %v287 = vld [vmem:[%s6 + $0x30] sm:$0xff]
    %v288 = vld [vmem:[%s6 + $0x38] sm:$0xff]
    %v289 = vld [vmem:[%s6 + $0x40] sm:$0xff]
    %v290 = vld [vmem:[%s6 + $0x48] sm:$0xff]
    %v291 = vld [vmem:[%s6 + $0x50] sm:$0xff]
    %v292 = vld [vmem:[%s6 + $0x58] sm:$0xff]
    %v293 = vld [vmem:[%s6 + $0x60] sm:$0xff]
    %v294 = vld [vmem:[%s6 + $0x68] sm:$0xff]
    %v295 = vld [vmem:[%s6 + $0x70] sm:$0xff]
    %v296 = vld [vmem:[%s6 + $0x78] sm:$0xff]
    %v297 = vld [vmem:[%s7] sm:$0xf]
    %v299 = vperm.slane %v297, 0
    %v300 = vperm.slane %v297, 1
    %v301 = vperm.slane %v297, 2
    %v302 = vperm.slane %v297, 3
    %v308 = vsel %vm54, %v279, 0
    %v311 = vsel %vm54, %v280, 0
    %313 = vmatpush.msra.mxu0 0.0
    %314 = vmatpush.msra.mxu0 0.0
    %315 = vmatpush.msra.mxu0 0.0
    %316 = vmatpush.msra.mxu0 0.0
    %317 = vmatpush.msra.mxu0 0.0
    %318 = vmatpush.msra.mxu0 0.0
    %319 = vmatpush.msra.mxu0 0.0
    %320 = vmatpush.msra.mxu0 0.0
    %321 = vmatpush.msra.mxu0 0.0
    %322 = vmatpush.msra.mxu0 0.0
    %323 = vmatpush.msra.mxu0 0.0
    %324 = vmatpush.msra.mxu0 0.0
    %325 = vmatpush.msra.mxu0 %v293
    %326 = vmatpush.msra.mxu0 %v289
    %327 = vmatpush.msra.mxu0 %v285
    %328 = vmatpush.msra.mxu0 %v281
    %329 = vmatmul.f32.gmra.mxu0 %v308
    %v330 = vpop.f32.mrf.mxu0
    %v331 = vadd.f32 %v299, %v330
    %332 = vmatmul.f32.gmra.mxu0 %v311
    %v333 = vpop.f32.mrf.mxu0
    %v334 = vadd.f32 %v299, %v333
    %335 = vdwg.mxu0
    %336 = vmatpush.msra.mxu0 0.0
    %337 = vmatpush.msra.mxu0 0.0
    %338 = vmatpush.msra.mxu0 0.0
    %339 = vmatpush.msra.mxu0 0.0
    %340 = vmatpush.msra.mxu0 0.0
    %341 = vmatpush.msra.mxu0 0.0
    %342 = vmatpush.msra.mxu0 0.0
    %343 = vmatpush.msra.mxu0 0.0
    %344 = vmatpush.msra.mxu0 0.0
    %345 = vmatpush.msra.mxu0 0.0
    %346 = vmatpush.msra.mxu0 0.0
    %347 = vmatpush.msra.mxu0 0.0
    %348 = vmatpush.msra.mxu0 %v294
    %349 = vmatpush.msra.mxu0 %v290
    %350 = vmatpush.msra.mxu0 %v286
    %351 = vmatpush.msra.mxu0 %v282
    %352 = vmatmul.f32.gmra.mxu0 %v308
    %v353 = vpop.f32.mrf.mxu0
    %v354 = vadd.f32 %v300, %v353
    %355 = vmatmul.f32.gmra.mxu0 %v311
    %v356 = vpop.f32.mrf.mxu0
    %v357 = vadd.f32 %v300, %v356
    %358 = vdwg.mxu0
    %359 = vmatpush.msra.mxu0 0.0
    %360 = vmatpush.msra.mxu0 0.0
    %361 = vmatpush.msra.mxu0 0.0
    %362 = vmatpush.msra.mxu0 0.0
    %363 = vmatpush.msra.mxu0 0.0
    %364 = vmatpush.msra.mxu0 0.0
    %365 = vmatpush.msra.mxu0 0.0
    %366 = vmatpush.msra.mxu0 0.0
    %367 = vmatpush.msra.mxu0 0.0
    %368 = vmatpush.msra.mxu0 0.0
    %369 = vmatpush.msra.mxu0 0.0
    %370 = vmatpush.msra.mxu0 0.0
    %371 = vmatpush.msra.mxu0 %v295
    %372 = vmatpush.msra.mxu0 %v291
    %373 = vmatpush.msra.mxu0 %v287
    %374 = vmatpush.msra.mxu0 %v283
    %375 = vmatmul.f32.gmra.mxu0 %v308
    %v376 = vpop.f32.mrf.mxu0
    %v377 = vadd.f32 %v301, %v376
    %378 = vmatmul.f32.gmra.mxu0 %v311
    %v379 = vpop.f32.mrf.mxu0
    %v380 = vadd.f32 %v301, %v379
    %381 = vdwg.mxu0
    %382 = vmatpush.msra.mxu0 0.0
    %383 = vmatpush.msra.mxu0 0.0
    %384 = vmatpush.msra.mxu0 0.0
    %385 = vmatpush.msra.mxu0 0.0
    %386 = vmatpush.msra.mxu0 0.0
    %387 = vmatpush.msra.mxu0 0.0
    %388 = vmatpush.msra.mxu0 0.0
    %389 = vmatpush.msra.mxu0 0.0
    %390 = vmatpush.msra.mxu0 0.0
    %391 = vmatpush.msra.mxu0 0.0
    %392 = vmatpush.msra.mxu0 0.0
    %393 = vmatpush.msra.mxu0 0.0
    %394 = vmatpush.msra.mxu0 %v296
    %395 = vmatpush.msra.mxu0 %v292
    %396 = vmatpush.msra.mxu0 %v288
    %397 = vmatpush.msra.mxu0 %v284
    %398 = vmatmul.f32.gmra.mxu0 %v308
    %v399 = vpop.f32.mrf.mxu0
    %v400 = vadd.f32 %v302, %v399
    %401 = vmatmul.f32.gmra.mxu0 %v311
    %v402 = vpop.f32.mrf.mxu0
    %v403 = vadd.f32 %v302, %v402
    %404 = vdwg.mxu0
    %405 = vmatpush.xpose.msra.mxu0 0.0
    %406 = vmatpush.xpose.msra.mxu0 0.0
    %407 = vmatpush.xpose.msra.mxu0 0.0
    %408 = vmatpush.xpose.msra.mxu0 0.0
    %409 = vmatpush.xpose.msra.mxu0 0.0
    %410 = vmatpush.xpose.msra.mxu0 0.0
    %411 = vmatpush.xpose.msra.mxu0 0.0
    %412 = vmatpush.xpose.msra.mxu0 0.0
    %413 = vmatpush.xpose.msra.mxu0 0.0
    %414 = vmatpush.xpose.msra.mxu0 0.0
    %415 = vmatpush.xpose.msra.mxu0 0.0
    %416 = vmatpush.xpose.msra.mxu0 0.0
    %417 = vmatpush.xpose.msra.mxu0 0.0
    %418 = vmatpush.xpose.msra.mxu0 0.0
    %419 = vmatpush.xpose.msra.mxu0 0.0
    %420 = vmatpush.xpose.msra.mxu0 %v205
    %421 = vmatmul.f32.gmra.mxu0 %v79
    %v422 = vpop.f32.mrf.mxu0
    %v423 = vadd.f32 0.0, %v422
    %424 = vdwg.mxu0
    %425 = vmatpush.xpose.msra.mxu0 0.0
    %426 = vmatpush.xpose.msra.mxu0 0.0
    %427 = vmatpush.xpose.msra.mxu0 0.0
    %428 = vmatpush.xpose.msra.mxu0 0.0
    %429 = vmatpush.xpose.msra.mxu0 0.0
    %430 = vmatpush.xpose.msra.mxu0 0.0
    %431 = vmatpush.xpose.msra.mxu0 0.0
    %432 = vmatpush.xpose.msra.mxu0 0.0
    %433 = vmatpush.xpose.msra.mxu0 0.0
    %434 = vmatpush.xpose.msra.mxu0 0.0
    %435 = vmatpush.xpose.msra.mxu0 0.0
    %436 = vmatpush.xpose.msra.mxu0 0.0
    %437 = vmatpush.xpose.msra.mxu0 0.0
    %438 = vmatpush.xpose.msra.mxu0 0.0
    %439 = vmatpush.xpose.msra.mxu0 0.0
    %440 = vmatpush.xpose.msra.mxu0 %v208
    %441 = vmatmul.f32.gmra.mxu0 %v82
    %v442 = vpop.f32.mrf.mxu0
    %v443 = vadd.f32 0.0, %v442
    %444 = vdwg.mxu0
    %vm445 = vcmask 64512
    %v446 = vsel %vm445, %v423, -inf
    %447 = vmax.xlane.f32.xlu0 %v446
    %v448 = vpop.xlane.xlu0 %447
    %v449 = vsel %vm445, %v443, -inf
    %450 = vmax.xlane.f32.xlu0 %v449
    %v451 = vpop.xlane.xlu0 %450
    %v452 = vsub.f32 %v423, %v448
    %v453 = vsub.f32 %v443, %v451
    %v454 = vmul.f32 %v452, 1.442695
    %v455 = vpow.pop %v454
    %v456 = vmul.f32 %v453, 1.442695
    %v457 = vpow.pop %v456
    %v458 = vsel %vm445, %v455, 0.0
    %459 = vadd.xlane.f32.xlu0 %v458
    %v460 = vpop.xlane.xlu0 %459
    %v461 = vsel %vm445, %v457, 0.0
    %462 = vadd.xlane.f32.xlu0 %v461
    %v463 = vpop.xlane.xlu0 %462
    %v465 = vsel %vm445, %v455, 0
    %467 = vmatpush.msra.mxu0 0.0
    %468 = vmatpush.msra.mxu0 0.0
    %469 = vmatpush.msra.mxu0 0.0
    %470 = vmatpush.msra.mxu0 0.0
    %471 = vmatpush.msra.mxu0 0.0
    %472 = vmatpush.msra.mxu0 0.0
    %473 = vmatpush.msra.mxu0 0.0
    %474 = vmatpush.msra.mxu0 0.0
    %475 = vmatpush.msra.mxu0 0.0
    %476 = vmatpush.msra.mxu0 0.0
    %477 = vmatpush.msra.mxu0 0.0
    %478 = vmatpush.msra.mxu0 0.0
    %479 = vmatpush.msra.mxu0 0.0
    %480 = vmatpush.msra.mxu0 0.0
    %481 = vmatpush.msra.mxu0 0.0
    %482 = vmatpush.msra.mxu0 %v331
    %483 = vmatmul.f32.gmra.mxu0 %v465
    %v484 = vpop.f32.mrf.mxu0
    %v485 = vadd.f32 0.0, %v484
    %486 = vdwg.mxu0
    %v488 = vsel %vm445, %v457, 0
    %490 = vmatpush.msra.mxu0 0.0
    %491 = vmatpush.msra.mxu0 0.0
    %492 = vmatpush.msra.mxu0 0.0
    %493 = vmatpush.msra.mxu0 0.0
    %494 = vmatpush.msra.mxu0 0.0
    %495 = vmatpush.msra.mxu0 0.0
    %496 = vmatpush.msra.mxu0 0.0
    %497 = vmatpush.msra.mxu0 0.0
    %498 = vmatpush.msra.mxu0 0.0
    %499 = vmatpush.msra.mxu0 0.0
    %500 = vmatpush.msra.mxu0 0.0
    %501 = vmatpush.msra.mxu0 0.0
    %502 = vmatpush.msra.mxu0 0.0
    %503 = vmatpush.msra.mxu0 0.0
    %504 = vmatpush.msra.mxu0 0.0
    %505 = vmatpush.msra.mxu0 %v334
    %506 = vmatmul.f32.gmra.mxu0 %v488
    %v507 = vpop.f32.mrf.mxu0
    %v508 = vadd.f32 0.0, %v507
    %509 = vdwg.mxu0
    %v510 = vrcp.pop %v460
    %v511 = vmul.f32 %v460, %v510
    %v512 = vsub.f32 1.0, %v511
    %v513 = vmul.f32 %v510, %v512
    %v514 = vadd.f32 %v510, %v513
    %vm515 = vweird.f32 %v460
    %vm516 = vweird.f32 %v510
    %vm517 = vmor %vm515, %vm516
    %v518 = vsel %vm517, %v510, %v514
    %v519 = vand.u32 2147483647, %v460
    %vm520 = vcmp.eq.f32.partialorder %v519, 8.507059e+37
    %v521 = vand.u32 %v460, 2147483648
    %v522 = vor.u32 1.1754944e-38, %v521
    %v523 = vsel %vm520, %v522, %v518
    %v524 = vrcp.pop %v463
    %v525 = vmul.f32 %v463, %v524
    %v526 = vsub.f32 1.0, %v525
    %v527 = vmul.f32 %v524, %v526
    %v528 = vadd.f32 %v524, %v527
    %vm529 = vweird.f32 %v463
    %vm530 = vweird.f32 %v524
    %vm531 = vmor %vm529, %vm530
    %v532 = vsel %vm531, %v524, %v528
    %v533 = vand.u32 2147483647, %v463
    %vm534 = vcmp.eq.f32.partialorder %v533, 8.507059e+37
    %v535 = vand.u32 %v463, 2147483648
    %v536 = vor.u32 1.1754944e-38, %v535
    %v537 = vsel %vm534, %v536, %v532
    %v538 = vmul.f32 %v485, %v523
    %v539 = vmul.f32 %v508, %v537
    %v540 = vld [vmem:[%s8] sm:$0xff]
    %v541 = vld [vmem:[%s8 + $0x8] sm:$0xff]
    %v542 = vld [vmem:[%s8 + $0x10] sm:$0xff]
    %v543 = vld [vmem:[%s8 + $0x18] sm:$0xff]
    %v544 = vld [vmem:[%s8 + $0x20] sm:$0xff]
    %v545 = vld [vmem:[%s8 + $0x28] sm:$0xff]
    %v546 = vld [vmem:[%s8 + $0x30] sm:$0xff]
    %v547 = vld [vmem:[%s8 + $0x38] sm:$0xff]
    %v548 = vld [vmem:[%s8 + $0x40] sm:$0xff]
    %v549 = vld [vmem:[%s8 + $0x48] sm:$0xff]
    %v550 = vld [vmem:[%s8 + $0x50] sm:$0xff]
    %v551 = vld [vmem:[%s8 + $0x58] sm:$0xff]
    %v552 = vld [vmem:[%s8 + $0x60] sm:$0xff]
    %v553 = vld [vmem:[%s8 + $0x68] sm:$0xff]
    %v554 = vld [vmem:[%s8 + $0x70] sm:$0xff]
    %v555 = vld [vmem:[%s8 + $0x78] sm:$0xff]
    %556 = vmatpush.xpose.msra.mxu0 0.0
    %557 = vmatpush.xpose.msra.mxu0 0.0
    %558 = vmatpush.xpose.msra.mxu0 0.0
    %559 = vmatpush.xpose.msra.mxu0 0.0
    %560 = vmatpush.xpose.msra.mxu0 0.0
    %561 = vmatpush.xpose.msra.mxu0 0.0
    %562 = vmatpush.xpose.msra.mxu0 0.0
    %563 = vmatpush.xpose.msra.mxu0 0.0
    %564 = vmatpush.xpose.msra.mxu0 0.0
    %565 = vmatpush.xpose.msra.mxu0 0.0
    %566 = vmatpush.xpose.msra.mxu0 0.0
    %567 = vmatpush.xpose.msra.mxu0 0.0
    %568 = vmatpush.xpose.msra.mxu0 0.0
    %569 = vmatpush.xpose.msra.mxu0 0.0
    %570 = vmatpush.xpose.msra.mxu0 0.0
    %571 = vmatpush.xpose.msra.mxu0 %v228
    %572 = vmatmul.f32.gmra.mxu0 %v102
    %v573 = vpop.f32.mrf.mxu0
    %v574 = vadd.f32 0.0, %v573
    %575 = vdwg.mxu0
    %576 = vmatpush.xpose.msra.mxu0 0.0
    %577 = vmatpush.xpose.msra.mxu0 0.0
    %578 = vmatpush.xpose.msra.mxu0 0.0
    %579 = vmatpush.xpose.msra.mxu0 0.0
    %580 = vmatpush.xpose.msra.mxu0 0.0
    %581 = vmatpush.xpose.msra.mxu0 0.0
    %582 = vmatpush.xpose.msra.mxu0 0.0
    %583 = vmatpush.xpose.msra.mxu0 0.0
    %584 = vmatpush.xpose.msra.mxu0 0.0
    %585 = vmatpush.xpose.msra.mxu0 0.0
    %586 = vmatpush.xpose.msra.mxu0 0.0
    %587 = vmatpush.xpose.msra.mxu0 0.0
    %588 = vmatpush.xpose.msra.mxu0 0.0
    %589 = vmatpush.xpose.msra.mxu0 0.0
    %590 = vmatpush.xpose.msra.mxu0 0.0
    %591 = vmatpush.xpose.msra.mxu0 %v231
    %592 = vmatmul.f32.gmra.mxu0 %v105
    %v593 = vpop.f32.mrf.mxu0
    %v594 = vadd.f32 0.0, %v593
    %595 = vdwg.mxu0
    %v596 = vsel %vm445, %v574, -inf
    %597 = vmax.xlane.f32.xlu0 %v596
    %v598 = vpop.xlane.xlu0 %597
    %v599 = vsel %vm445, %v594, -inf
    %600 = vmax.xlane.f32.xlu0 %v599
    %v601 = vpop.xlane.xlu0 %600
    %v602 = vsub.f32 %v574, %v598
    %v603 = vsub.f32 %v594, %v601
    %v604 = vmul.f32 %v602, 1.442695
    %v605 = vpow.pop %v604
    %v606 = vmul.f32 %v603, 1.442695
    %v607 = vpow.pop %v606
    %v608 = vsel %vm445, %v605, 0.0
    %609 = vadd.xlane.f32.xlu0 %v608
    %v610 = vpop.xlane.xlu0 %609
    %v611 = vsel %vm445, %v607, 0.0
    %612 = vadd.xlane.f32.xlu0 %v611
    %v613 = vpop.xlane.xlu0 %612
    %v615 = vsel %vm445, %v605, 0
    %617 = vmatpush.msra.mxu0 0.0
    %618 = vmatpush.msra.mxu0 0.0
    %619 = vmatpush.msra.mxu0 0.0
    %620 = vmatpush.msra.mxu0 0.0
    %621 = vmatpush.msra.mxu0 0.0
    %622 = vmatpush.msra.mxu0 0.0
    %623 = vmatpush.msra.mxu0 0.0
    %624 = vmatpush.msra.mxu0 0.0
    %625 = vmatpush.msra.mxu0 0.0
    %626 = vmatpush.msra.mxu0 0.0
    %627 = vmatpush.msra.mxu0 0.0
    %628 = vmatpush.msra.mxu0 0.0
    %629 = vmatpush.msra.mxu0 0.0
    %630 = vmatpush.msra.mxu0 0.0
    %631 = vmatpush.msra.mxu0 0.0
    %632 = vmatpush.msra.mxu0 %v354
    %633 = vmatmul.f32.gmra.mxu0 %v615
    %v634 = vpop.f32.mrf.mxu0
    %v635 = vadd.f32 0.0, %v634
    %636 = vdwg.mxu0
    %v638 = vsel %vm445, %v607, 0
    %640 = vmatpush.msra.mxu0 0.0
    %641 = vmatpush.msra.mxu0 0.0
    %642 = vmatpush.msra.mxu0 0.0
    %643 = vmatpush.msra.mxu0 0.0
    %644 = vmatpush.msra.mxu0 0.0
    %645 = vmatpush.msra.mxu0 0.0
    %646 = vmatpush.msra.mxu0 0.0
    %647 = vmatpush.msra.mxu0 0.0
    %648 = vmatpush.msra.mxu0 0.0
    %649 = vmatpush.msra.mxu0 0.0
    %650 = vmatpush.msra.mxu0 0.0
    %651 = vmatpush.msra.mxu0 0.0
    %652 = vmatpush.msra.mxu0 0.0
    %653 = vmatpush.msra.mxu0 0.0
    %654 = vmatpush.msra.mxu0 0.0
    %655 = vmatpush.msra.mxu0 %v357
    %656 = vmatmul.f32.gmra.mxu0 %v638
    %v657 = vpop.f32.mrf.mxu0
    %v658 = vadd.f32 0.0, %v657
    %659 = vdwg.mxu0
    %v660 = vrcp.pop %v610
    %v661 = vmul.f32 %v610, %v660
    %v662 = vsub.f32 1.0, %v661
    %v663 = vmul.f32 %v660, %v662
    %v664 = vadd.f32 %v660, %v663
    %vm665 = vweird.f32 %v610
    %vm666 = vweird.f32 %v660
    %vm667 = vmor %vm665, %vm666
    %v668 = vsel %vm667, %v660, %v664
    %v669 = vand.u32 2147483647, %v610
    %vm670 = vcmp.eq.f32.partialorder %v669, 8.507059e+37
    %v671 = vand.u32 %v610, 2147483648
    %v672 = vor.u32 1.1754944e-38, %v671
    %v673 = vsel %vm670, %v672, %v668
    %v674 = vrcp.pop %v613
    %v675 = vmul.f32 %v613, %v674
    %v676 = vsub.f32 1.0, %v675
    %v677 = vmul.f32 %v674, %v676
    %v678 = vadd.f32 %v674, %v677
    %vm679 = vweird.f32 %v613
    %vm680 = vweird.f32 %v674
    %vm681 = vmor %vm679, %vm680
    %v682 = vsel %vm681, %v674, %v678
    %v683 = vand.u32 2147483647, %v613
    %vm684 = vcmp.eq.f32.partialorder %v683, 8.507059e+37
    %v685 = vand.u32 %v613, 2147483648
    %v686 = vor.u32 1.1754944e-38, %v685
    %v687 = vsel %vm684, %v686, %v682
    %v688 = vmul.f32 %v635, %v673
    %v689 = vmul.f32 %v658, %v687
    %v690 = vld [vmem:[%s8 + $0x80] sm:$0xff]
    %v691 = vld [vmem:[%s8 + $0x88] sm:$0xff]
    %v692 = vld [vmem:[%s8 + $0x90] sm:$0xff]
    %v693 = vld [vmem:[%s8 + $0x98] sm:$0xff]
    %v694 = vld [vmem:[%s8 + $0xa0] sm:$0xff]
    %v695 = vld [vmem:[%s8 + $0xa8] sm:$0xff]
    %v696 = vld [vmem:[%s8 + $0xb0] sm:$0xff]
    %v697 = vld [vmem:[%s8 + $0xb8] sm:$0xff]
    %v698 = vld [vmem:[%s8 + $0xc0] sm:$0xff]
    %v699 = vld [vmem:[%s8 + $0xc8] sm:$0xff]
    %v700 = vld [vmem:[%s8 + $0xd0] sm:$0xff]
    %v701 = vld [vmem:[%s8 + $0xd8] sm:$0xff]
    %v702 = vld [vmem:[%s8 + $0xe0] sm:$0xff]
    %v703 = vld [vmem:[%s8 + $0xe8] sm:$0xff]
    %v704 = vld [vmem:[%s8 + $0xf0] sm:$0xff]
    %v705 = vld [vmem:[%s8 + $0xf8] sm:$0xff]
    %706 = vmatpush.msra.mxu0 %v705
    %707 = vmatpush.msra.mxu0 %v704
    %708 = vmatpush.msra.mxu0 %v703
    %709 = vmatpush.msra.mxu0 %v702
    %710 = vmatpush.msra.mxu0 %v701
    %711 = vmatpush.msra.mxu0 %v700
    %712 = vmatpush.msra.mxu0 %v699
    %713 = vmatpush.msra.mxu0 %v698
    %714 = vmatpush.msra.mxu0 %v697
    %715 = vmatpush.msra.mxu0 %v696
    %716 = vmatpush.msra.mxu0 %v695
    %717 = vmatpush.msra.mxu0 %v694
    %718 = vmatpush.msra.mxu0 %v693
    %719 = vmatpush.msra.mxu0 %v692
    %720 = vmatpush.msra.mxu0 %v691
    %721 = vmatpush.msra.mxu0 %v690
    %722 = vmatmul.f32.gmra.mxu0 %v688
    %v723 = vpop.f32.mrf.mxu0
    %v724 = vadd.f32 0.0, %v723
    %725 = vmatmul.f32.gmra.mxu0 %v689
    %v726 = vpop.f32.mrf.mxu0
    %v727 = vadd.f32 0.0, %v726
    %728 = vdwg.mxu0
    %729 = vmatpush.msra.mxu0 %v555
    %730 = vmatpush.msra.mxu0 %v554
    %731 = vmatpush.msra.mxu0 %v553
    %732 = vmatpush.msra.mxu0 %v552
    %733 = vmatpush.msra.mxu0 %v551
    %734 = vmatpush.msra.mxu0 %v550
    %735 = vmatpush.msra.mxu0 %v549
    %736 = vmatpush.msra.mxu0 %v548
    %737 = vmatpush.msra.mxu0 %v547
    %738 = vmatpush.msra.mxu0 %v546
    %739 = vmatpush.msra.mxu0 %v545
    %740 = vmatpush.msra.mxu0 %v544
    %741 = vmatpush.msra.mxu0 %v543
    %742 = vmatpush.msra.mxu0 %v542
    %743 = vmatpush.msra.mxu0 %v541
    %744 = vmatpush.msra.mxu0 %v540
    %745 = vmatmul.f32.gmra.mxu0 %v538
    %v746 = vpop.f32.mrf.mxu0
    %v747 = vadd.f32 %v724, %v746
    %748 = vmatmul.f32.gmra.mxu0 %v539
    %v749 = vpop.f32.mrf.mxu0
    %v750 = vadd.f32 %v727, %v749
    %751 = vdwg.mxu0
    %752 = vmatpush.xpose.msra.mxu0 0.0
    %753 = vmatpush.xpose.msra.mxu0 0.0
    %754 = vmatpush.xpose.msra.mxu0 0.0
    %755 = vmatpush.xpose.msra.mxu0 0.0
    %756 = vmatpush.xpose.msra.mxu0 0.0
    %757 = vmatpush.xpose.msra.mxu0 0.0
    %758 = vmatpush.xpose.msra.mxu0 0.0
    %759 = vmatpush.xpose.msra.mxu0 0.0
    %760 = vmatpush.xpose.msra.mxu0 0.0
    %761 = vmatpush.xpose.msra.mxu0 0.0
    %762 = vmatpush.xpose.msra.mxu0 0.0
    %763 = vmatpush.xpose.msra.mxu0 0.0
    %764 = vmatpush.xpose.msra.mxu0 0.0
    %765 = vmatpush.xpose.msra.mxu0 0.0
    %766 = vmatpush.xpose.msra.mxu0 0.0
    %767 = vmatpush.xpose.msra.mxu0 %v251
    %768 = vmatmul.f32.gmra.mxu0 %v125
    %v769 = vpop.f32.mrf.mxu0
    %v770 = vadd.f32 0.0, %v769
    %771 = vdwg.mxu0
    %772 = vmatpush.xpose.msra.mxu0 0.0
    %773 = vmatpush.xpose.msra.mxu0 0.0
    %774 = vmatpush.xpose.msra.mxu0 0.0
    %775 = vmatpush.xpose.msra.mxu0 0.0
    %776 = vmatpush.xpose.msra.mxu0 0.0
    %777 = vmatpush.xpose.msra.mxu0 0.0
    %778 = vmatpush.xpose.msra.mxu0 0.0
    %779 = vmatpush.xpose.msra.mxu0 0.0
    %780 = vmatpush.xpose.msra.mxu0 0.0
    %781 = vmatpush.xpose.msra.mxu0 0.0
    %782 = vmatpush.xpose.msra.mxu0 0.0
    %783 = vmatpush.xpose.msra.mxu0 0.0
    %784 = vmatpush.xpose.msra.mxu0 0.0
    %785 = vmatpush.xpose.msra.mxu0 0.0
    %786 = vmatpush.xpose.msra.mxu0 0.0
    %787 = vmatpush.xpose.msra.mxu0 %v254
    %788 = vmatmul.f32.gmra.mxu0 %v128
    %v789 = vpop.f32.mrf.mxu0
    %v790 = vadd.f32 0.0, %v789
    %791 = vdwg.mxu0
    %v792 = vsel %vm445, %v770, -inf
    %793 = vmax.xlane.f32.xlu0 %v792
    %v794 = vpop.xlane.xlu0 %793
    %v795 = vsel %vm445, %v790, -inf
    %796 = vmax.xlane.f32.xlu0 %v795
    %v797 = vpop.xlane.xlu0 %796
    %v798 = vsub.f32 %v770, %v794
    %v799 = vsub.f32 %v790, %v797
    %v800 = vmul.f32 %v798, 1.442695
    %v801 = vpow.pop %v800
    %v802 = vmul.f32 %v799, 1.442695
    %v803 = vpow.pop %v802
    %v804 = vsel %vm445, %v801, 0.0
    %805 = vadd.xlane.f32.xlu0 %v804
    %v806 = vpop.xlane.xlu0 %805
    %v807 = vsel %vm445, %v803, 0.0
    %808 = vadd.xlane.f32.xlu0 %v807
    %v809 = vpop.xlane.xlu0 %808
    %v811 = vsel %vm445, %v801, 0
    %813 = vmatpush.msra.mxu0 0.0
    %814 = vmatpush.msra.mxu0 0.0
    %815 = vmatpush.msra.mxu0 0.0
    %816 = vmatpush.msra.mxu0 0.0
    %817 = vmatpush.msra.mxu0 0.0
    %818 = vmatpush.msra.mxu0 0.0
    %819 = vmatpush.msra.mxu0 0.0
    %820 = vmatpush.msra.mxu0 0.0
    %821 = vmatpush.msra.mxu0 0.0
    %822 = vmatpush.msra.mxu0 0.0
    %823 = vmatpush.msra.mxu0 0.0
    %824 = vmatpush.msra.mxu0 0.0
    %825 = vmatpush.msra.mxu0 0.0
    %826 = vmatpush.msra.mxu0 0.0
    %827 = vmatpush.msra.mxu0 0.0
    %828 = vmatpush.msra.mxu0 %v377
    %829 = vmatmul.f32.gmra.mxu0 %v811
    %v830 = vpop.f32.mrf.mxu0
    %v831 = vadd.f32 0.0, %v830
    %832 = vdwg.mxu0
    %v834 = vsel %vm445, %v803, 0
    %836 = vmatpush.msra.mxu0 0.0
    %837 = vmatpush.msra.mxu0 0.0
    %838 = vmatpush.msra.mxu0 0.0
    %839 = vmatpush.msra.mxu0 0.0
    %840 = vmatpush.msra.mxu0 0.0
    %841 = vmatpush.msra.mxu0 0.0
    %842 = vmatpush.msra.mxu0 0.0
    %843 = vmatpush.msra.mxu0 0.0
    %844 = vmatpush.msra.mxu0 0.0
    %845 = vmatpush.msra.mxu0 0.0
    %846 = vmatpush.msra.mxu0 0.0
    %847 = vmatpush.msra.mxu0 0.0
    %848 = vmatpush.msra.mxu0 0.0
    %849 = vmatpush.msra.mxu0 0.0
    %850 = vmatpush.msra.mxu0 0.0
    %851 = vmatpush.msra.mxu0 %v380
    %852 = vmatmul.f32.gmra.mxu0 %v834
    %v853 = vpop.f32.mrf.mxu0
    %v854 = vadd.f32 0.0, %v853
    %855 = vdwg.mxu0
    %v856 = vrcp.pop %v806
    %v857 = vmul.f32 %v806, %v856
    %v858 = vsub.f32 1.0, %v857
    %v859 = vmul.f32 %v856, %v858
    %v860 = vadd.f32 %v856, %v859
    %vm861 = vweird.f32 %v806
    %vm862 = vweird.f32 %v856
    %vm863 = vmor %vm861, %vm862
    %v864 = vsel %vm863, %v856, %v860
    %v865 = vand.u32 2147483647, %v806
    %vm866 = vcmp.eq.f32.partialorder %v865, 8.507059e+37
    %v867 = vand.u32 %v806, 2147483648
    %v868 = vor.u32 1.1754944e-38, %v867
    %v869 = vsel %vm866, %v868, %v864
    %v870 = vrcp.pop %v809
    %v871 = vmul.f32 %v809, %v870
    %v872 = vsub.f32 1.0, %v871
    %v873 = vmul.f32 %v870, %v872
    %v874 = vadd.f32 %v870, %v873
    %vm875 = vweird.f32 %v809
    %vm876 = vweird.f32 %v870
    %vm877 = vmor %vm875, %vm876
    %v878 = vsel %vm877, %v870, %v874
    %v879 = vand.u32 2147483647, %v809
    %vm880 = vcmp.eq.f32.partialorder %v879, 8.507059e+37
    %v881 = vand.u32 %v809, 2147483648
    %v882 = vor.u32 1.1754944e-38, %v881
    %v883 = vsel %vm880, %v882, %v878
    %v884 = vmul.f32 %v831, %v869
    %v885 = vmul.f32 %v854, %v883
    %v886 = vld [vmem:[%s8 + $0x100] sm:$0xff]
    %v887 = vld [vmem:[%s8 + $0x108] sm:$0xff]
    %v888 = vld [vmem:[%s8 + $0x110] sm:$0xff]
    %v889 = vld [vmem:[%s8 + $0x118] sm:$0xff]
    %v890 = vld [vmem:[%s8 + $0x120] sm:$0xff]
    %v891 = vld [vmem:[%s8 + $0x128] sm:$0xff]
    %v892 = vld [vmem:[%s8 + $0x130] sm:$0xff]
    %v893 = vld [vmem:[%s8 + $0x138] sm:$0xff]
    %v894 = vld [vmem:[%s8 + $0x140] sm:$0xff]
    %v895 = vld [vmem:[%s8 + $0x148] sm:$0xff]
    %v896 = vld [vmem:[%s8 + $0x150] sm:$0xff]
    %v897 = vld [vmem:[%s8 + $0x158] sm:$0xff]
    %v898 = vld [vmem:[%s8 + $0x160] sm:$0xff]
    %v899 = vld [vmem:[%s8 + $0x168] sm:$0xff]
    %v900 = vld [vmem:[%s8 + $0x170] sm:$0xff]
    %v901 = vld [vmem:[%s8 + $0x178] sm:$0xff]
    %902 = vmatpush.msra.mxu0 %v901
    %903 = vmatpush.msra.mxu0 %v900
    %904 = vmatpush.msra.mxu0 %v899
    %905 = vmatpush.msra.mxu0 %v898
    %906 = vmatpush.msra.mxu0 %v897
    %907 = vmatpush.msra.mxu0 %v896
    %908 = vmatpush.msra.mxu0 %v895
    %909 = vmatpush.msra.mxu0 %v894
    %910 = vmatpush.msra.mxu0 %v893
    %911 = vmatpush.msra.mxu0 %v892
    %912 = vmatpush.msra.mxu0 %v891
    %913 = vmatpush.msra.mxu0 %v890
    %914 = vmatpush.msra.mxu0 %v889
    %915 = vmatpush.msra.mxu0 %v888
    %916 = vmatpush.msra.mxu0 %v887
    %917 = vmatpush.msra.mxu0 %v886
    %918 = vmatmul.f32.gmra.mxu0 %v884
    %v919 = vpop.f32.mrf.mxu0
    %v920 = vadd.f32 0.0, %v919
    %921 = vmatmul.f32.gmra.mxu0 %v885
    %v922 = vpop.f32.mrf.mxu0
    %v923 = vadd.f32 0.0, %v922
    %924 = vdwg.mxu0
    %v925 = vadd.f32 %v747, %v920
    %v926 = vadd.f32 %v750, %v923
    %927 = vmatpush.xpose.msra.mxu0 0.0
    %928 = vmatpush.xpose.msra.mxu0 0.0
    %929 = vmatpush.xpose.msra.mxu0 0.0
    %930 = vmatpush.xpose.msra.mxu0 0.0
    %931 = vmatpush.xpose.msra.mxu0 0.0
    %932 = vmatpush.xpose.msra.mxu0 0.0
    %933 = vmatpush.xpose.msra.mxu0 0.0
    %934 = vmatpush.xpose.msra.mxu0 0.0
    %935 = vmatpush.xpose.msra.mxu0 0.0
    %936 = vmatpush.xpose.msra.mxu0 0.0
    %937 = vmatpush.xpose.msra.mxu0 0.0
    %938 = vmatpush.xpose.msra.mxu0 0.0
    %939 = vmatpush.xpose.msra.mxu0 0.0
    %940 = vmatpush.xpose.msra.mxu0 0.0
    %941 = vmatpush.xpose.msra.mxu0 0.0
    %942 = vmatpush.xpose.msra.mxu0 %v274
    %943 = vmatmul.f32.gmra.mxu0 %v148
    %v944 = vpop.f32.mrf.mxu0
    %v945 = vadd.f32 0.0, %v944
    %946 = vdwg.mxu0
    %947 = vmatpush.xpose.msra.mxu0 0.0
    %948 = vmatpush.xpose.msra.mxu0 0.0
    %949 = vmatpush.xpose.msra.mxu0 0.0
    %950 = vmatpush.xpose.msra.mxu0 0.0
    %951 = vmatpush.xpose.msra.mxu0 0.0
    %952 = vmatpush.xpose.msra.mxu0 0.0
    %953 = vmatpush.xpose.msra.mxu0 0.0
    %954 = vmatpush.xpose.msra.mxu0 0.0
    %955 = vmatpush.xpose.msra.mxu0 0.0
    %956 = vmatpush.xpose.msra.mxu0 0.0
    %957 = vmatpush.xpose.msra.mxu0 0.0
    %958 = vmatpush.xpose.msra.mxu0 0.0
    %959 = vmatpush.xpose.msra.mxu0 0.0
    %960 = vmatpush.xpose.msra.mxu0 0.0
    %961 = vmatpush.xpose.msra.mxu0 0.0
    %962 = vmatpush.xpose.msra.mxu0 %v277
    %963 = vmatmul.f32.gmra.mxu0 %v151
    %v964 = vpop.f32.mrf.mxu0
    %v965 = vadd.f32 0.0, %v964
    %966 = vdwg.mxu0
    %v967 = vsel %vm445, %v945, -inf
    %968 = vmax.xlane.f32.xlu0 %v967
    %v969 = vpop.xlane.xlu0 %968
    %v970 = vsel %vm445, %v965, -inf
    %971 = vmax.xlane.f32.xlu0 %v970
    %v972 = vpop.xlane.xlu0 %971
    %v973 = vsub.f32 %v945, %v969
    %v974 = vsub.f32 %v965, %v972
    %v975 = vmul.f32 %v973, 1.442695
    %v976 = vpow.pop %v975
    %v977 = vmul.f32 %v974, 1.442695
    %v978 = vpow.pop %v977
    %v979 = vsel %vm445, %v976, 0.0
    %980 = vadd.xlane.f32.xlu0 %v979
    %v981 = vpop.xlane.xlu0 %980
    %v982 = vsel %vm445, %v978, 0.0
    %983 = vadd.xlane.f32.xlu0 %v982
    %v984 = vpop.xlane.xlu0 %983
    %v986 = vsel %vm445, %v976, 0
    %988 = vmatpush.msra.mxu0 0.0
    %989 = vmatpush.msra.mxu0 0.0
    %990 = vmatpush.msra.mxu0 0.0
    %991 = vmatpush.msra.mxu0 0.0
    %992 = vmatpush.msra.mxu0 0.0
    %993 = vmatpush.msra.mxu0 0.0
    %994 = vmatpush.msra.mxu0 0.0
    %995 = vmatpush.msra.mxu0 0.0
    %996 = vmatpush.msra.mxu0 0.0
    %997 = vmatpush.msra.mxu0 0.0
    %998 = vmatpush.msra.mxu0 0.0
    %999 = vmatpush.msra.mxu0 0.0
    %1000 = vmatpush.msra.mxu0 0.0
    %1001 = vmatpush.msra.mxu0 0.0
    %1002 = vmatpush.msra.mxu0 0.0
    %1003 = vmatpush.msra.mxu0 %v400
    %1004 = vmatmul.f32.gmra.mxu0 %v986
    %v1005 = vpop.f32.mrf.mxu0
    %v1006 = vadd.f32 0.0, %v1005
    %1007 = vdwg.mxu0
    %v1009 = vsel %vm445, %v978, 0
    %1011 = vmatpush.msra.mxu0 0.0
    %1012 = vmatpush.msra.mxu0 0.0
    %1013 = vmatpush.msra.mxu0 0.0
    %1014 = vmatpush.msra.mxu0 0.0
    %1015 = vmatpush.msra.mxu0 0.0
    %1016 = vmatpush.msra.mxu0 0.0
    %1017 = vmatpush.msra.mxu0 0.0
    %1018 = vmatpush.msra.mxu0 0.0
    %1019 = vmatpush.msra.mxu0 0.0
    %1020 = vmatpush.msra.mxu0 0.0
    %1021 = vmatpush.msra.mxu0 0.0
    %1022 = vmatpush.msra.mxu0 0.0
    %1023 = vmatpush.msra.mxu0 0.0
    %1024 = vmatpush.msra.mxu0 0.0
    %1025 = vmatpush.msra.mxu0 0.0
    %1026 = vmatpush.msra.mxu0 %v403
    %1027 = vmatmul.f32.gmra.mxu0 %v1009
    %v1028 = vpop.f32.mrf.mxu0
    %v1029 = vadd.f32 0.0, %v1028
    %1030 = vdwg.mxu0
    %v1031 = vrcp.pop %v981
    %v1032 = vmul.f32 %v981, %v1031
    %v1033 = vsub.f32 1.0, %v1032
    %v1034 = vmul.f32 %v1031, %v1033
    %v1035 = vadd.f32 %v1031, %v1034
    %vm1036 = vweird.f32 %v981
    %vm1037 = vweird.f32 %v1031
    %vm1038 = vmor %vm1036, %vm1037
    %v1039 = vsel %vm1038, %v1031, %v1035
    %v1040 = vand.u32 2147483647, %v981
    %vm1041 = vcmp.eq.f32.partialorder %v1040, 8.507059e+37
    %v1042 = vand.u32 %v981, 2147483648
    %v1043 = vor.u32 1.1754944e-38, %v1042
    %v1044 = vsel %vm1041, %v1043, %v1039
    %v1045 = vrcp.pop %v984
    %v1046 = vmul.f32 %v984, %v1045
    %v1047 = vsub.f32 1.0, %v1046
    %v1048 = vmul.f32 %v1045, %v1047
    %v1049 = vadd.f32 %v1045, %v1048
    %vm1050 = vweird.f32 %v984
    %vm1051 = vweird.f32 %v1045
    %vm1052 = vmor %vm1050, %vm1051
    %v1053 = vsel %vm1052, %v1045, %v1049
    %v1054 = vand.u32 2147483647, %v984
    %vm1055 = vcmp.eq.f32.partialorder %v1054, 8.507059e+37
    %v1056 = vand.u32 %v984, 2147483648
    %v1057 = vor.u32 1.1754944e-38, %v1056
    %v1058 = vsel %vm1055, %v1057, %v1053
    %v1059 = vmul.f32 %v1006, %v1044
    %v1060 = vmul.f32 %v1029, %v1058
    %v1061 = vld [vmem:[%s8 + $0x180] sm:$0xff]
    %v1062 = vld [vmem:[%s8 + $0x188] sm:$0xff]
    %v1063 = vld [vmem:[%s8 + $0x190] sm:$0xff]
    %v1064 = vld [vmem:[%s8 + $0x198] sm:$0xff]
    %v1065 = vld [vmem:[%s8 + $0x1a0] sm:$0xff]
    %v1066 = vld [vmem:[%s8 + $0x1a8] sm:$0xff]
    %v1067 = vld [vmem:[%s8 + $0x1b0] sm:$0xff]
    %v1068 = vld [vmem:[%s8 + $0x1b8] sm:$0xff]
    %v1069 = vld [vmem:[%s8 + $0x1c0] sm:$0xff]
    %v1070 = vld [vmem:[%s8 + $0x1c8] sm:$0xff]
    %v1071 = vld [vmem:[%s8 + $0x1d0] sm:$0xff]
    %v1072 = vld [vmem:[%s8 + $0x1d8] sm:$0xff]
    %v1073 = vld [vmem:[%s8 + $0x1e0] sm:$0xff]
    %v1074 = vld [vmem:[%s8 + $0x1e8] sm:$0xff]
    %v1075 = vld [vmem:[%s8 + $0x1f0] sm:$0xff]
    %v1076 = vld [vmem:[%s8 + $0x1f8] sm:$0xff]
    %1077 = vmatpush.msra.mxu0 %v1076
    %1078 = vmatpush.msra.mxu0 %v1075
    %1079 = vmatpush.msra.mxu0 %v1074
    %1080 = vmatpush.msra.mxu0 %v1073
    %1081 = vmatpush.msra.mxu0 %v1072
    %1082 = vmatpush.msra.mxu0 %v1071
    %1083 = vmatpush.msra.mxu0 %v1070
    %1084 = vmatpush.msra.mxu0 %v1069
    %1085 = vmatpush.msra.mxu0 %v1068
    %1086 = vmatpush.msra.mxu0 %v1067
    %1087 = vmatpush.msra.mxu0 %v1066
    %1088 = vmatpush.msra.mxu0 %v1065
    %1089 = vmatpush.msra.mxu0 %v1064
    %1090 = vmatpush.msra.mxu0 %v1063
    %1091 = vmatpush.msra.mxu0 %v1062
    %1092 = vmatpush.msra.mxu0 %v1061
    %1093 = vmatmul.f32.gmra.mxu0 %v1059
    %v1094 = vpop.f32.mrf.mxu0
    %v1095 = vadd.f32 0.0, %v1094
    %1096 = vmatmul.f32.gmra.mxu0 %v1060
    %v1097 = vpop.f32.mrf.mxu0
    %v1098 = vadd.f32 0.0, %v1097
    %1099 = vdwg.mxu0
    %v1100 = vadd.f32 %v925, %v1095
    %v1101 = vadd.f32 %v926, %v1098
    %v1102 = vld [vmem:[%s9] sm:$0x1]
    %v1104 = vperm.slane %v1102, 0
    %v1106 = vadd.f32 %v1100, %v1104
    %v1107 = vadd.f32 %v1101, %v1104
    %1108 = vst.msk [vmem:[#allocation2] sm:$0xff] %vm54, %v1106
    %1109 = vst.msk [vmem:[#allocation2 + $0x8] sm:$0xff] %vm54, %v1107
    // Predicated region
    $region42: #{tpu_custom_call.1} parent=1 // pred_check
      _
    $region43: #{tpu_custom_call.1} parent=1 // pred_check_branch
      %1111 = sbr.rel (0) target = $region45
    $region44: #{tpu_custom_call.1} parent=1 // pred_region
      %1113 = vsyncadd [#allocation3], 0
      %s1114 = sshll.u32 [#allocation2], 4
      %s1115 = int_to_ptr.vmem [resolvable:$true] %s1114
      %s1116 = sshll.u32 %s10, 4
      %s1117 = int_to_ptr.hbm [resolvable:$true] %s1116
      %1122 = dma.vmem_to_hbm [thread:$0]  %s1115, 256, %s1117, [#allocation3], 128, 128, 8
    $region45: #{tpu_custom_call.1} parent=1 // pred_fallthru
      _
    // Predicated region
    $region46: #{tpu_custom_call.1} parent=1 // pred_check
      _
    $region47: #{tpu_custom_call.1} parent=1 // pred_check_branch
      %1124 = sbr.rel (0) target = $region49
    $region48: #{tpu_custom_call.1} parent=1 // pred_region
      %1126 = dma.done [#allocation3], 256
    $region49: #{tpu_custom_call.1} parent=1 // pred_fallthru
      _
    %1127 = vsyncpa [#allocation3], 1

// kernel: tpu_custom_call.1
$region0: #{tpu_custom_call.1}
  #allocation0 [shape = 'u32[]', space=smem, size = 0x4, offset = 0x4, fixed_abs, tag = 'smem constant byte address 0x4 - core index']
  #allocation1 [shape = 'u32[72,128]{1,0:T(1,128)}', space=vmem, size = 0x9000, scoped, tag = 'internal scratch']
  %s0 = inlined_call_operand.vmem [shape: f32[2,8,32], index: 0, kind: input, shape index: {}]
  %s1 = inlined_call_operand.vmem [shape: f32[2,8,32], index: 1, kind: input, shape index: {}]
  %s2 = inlined_call_operand.vmem [shape: f32[2,8,32], index: 2, kind: input, shape index: {}]
  %s3 = inlined_call_operand.vmem [shape: f32[32,512], index: 3, kind: input, shape index: {}]
  %s4 = inlined_call_operand.vmem [shape: f32[32,512], index: 4, kind: input, shape index: {}]
  %s5 = inlined_call_operand.vmem [shape: f32[1,512], index: 5, kind: input, shape index: {}]
  %s6 = inlined_call_operand.vmem [shape: f32[32,512], index: 6, kind: input, shape index: {}]
  %s7 = inlined_call_operand.vmem [shape: f32[1,512], index: 7, kind: input, shape index: {}]
  %s8 = inlined_call_operand.vmem [shape: f32[512,32], index: 8, kind: input, shape index: {}]
  %s9 = inlined_call_operand.vmem [shape: f32[1,32], index: 9, kind: input, shape index: {}]
  %s10 = inlined_call_operand.hbm [shape: f32[2,8,32], index: 10, kind: output, shape index: {}]
  %s11 = sld [smem:[#allocation0]]
  $region50: #{tpu_custom_call.1} parent=0
    _
  %s13 = ssub.s32 1, %s11
  %s14 = scalar_select 0, %s13, %s11
  $region1: #{tpu_custom_call.1} parent=0
    #allocation2 [shape = 'u8[8192]{0}', space=vmem, size = 0x2000, scoped, tag = 'output window, operand 0, single buffered']
    #allocation3 [shape = 's32[1]{0}', space=sflag, size = 0x4, scoped, tag = 'scoped memory for tpu_custom_call.1']
    %15 = vsyncpa [#allocation3], 0
    // Predicated region
    $region2: #{tpu_custom_call.1} parent=1 // pred_check
      _
    $region3: #{tpu_custom_call.1} parent=1 // pred_check_branch
      %17 = sbr.rel (0) target = $region5
    $region4: #{tpu_custom_call.1} parent=1 // pred_region
      _
    $region5: #{tpu_custom_call.1} parent=1 // pred_fallthru
      _
    // Predicated region
    $region6: #{tpu_custom_call.1} parent=1 // pred_check
      _
    $region7: #{tpu_custom_call.1} parent=1 // pred_check_branch
      %19 = sbr.rel (0) target = $region9
    $region8: #{tpu_custom_call.1} parent=1 // pred_region
      _
    $region9: #{tpu_custom_call.1} parent=1 // pred_fallthru
      _
    // Predicated region
    $region10: #{tpu_custom_call.1} parent=1 // pred_check
      _
    $region11: #{tpu_custom_call.1} parent=1 // pred_check_branch
      %21 = sbr.rel (0) target = $region13
    $region12: #{tpu_custom_call.1} parent=1 // pred_region
      _
    $region13: #{tpu_custom_call.1} parent=1 // pred_fallthru
      _
    // Predicated region
    $region14: #{tpu_custom_call.1} parent=1 // pred_check
      _
    $region15: #{tpu_custom_call.1} parent=1 // pred_check_branch
      %23 = sbr.rel (0) target = $region17
    $region16: #{tpu_custom_call.1} parent=1 // pred_region
      _
    $region17: #{tpu_custom_call.1} parent=1 // pred_fallthru
      _
    // Predicated region
    $region18: #{tpu_custom_call.1} parent=1 // pred_check
      _
    $region19: #{tpu_custom_call.1} parent=1 // pred_check_branch
      %25 = sbr.rel (0) target = $region21
    $region20: #{tpu_custom_call.1} parent=1 // pred_region
      _
    $region21: #{tpu_custom_call.1} parent=1 // pred_fallthru
      _
    // Predicated region
    $region22: #{tpu_custom_call.1} parent=1 // pred_check
      _
    $region23: #{tpu_custom_call.1} parent=1 // pred_check_branch
      %27 = sbr.rel (0) target = $region25
    $region24: #{tpu_custom_call.1} parent=1 // pred_region
      _
    $region25: #{tpu_custom_call.1} parent=1 // pred_fallthru
      _
    // Predicated region
    $region26: #{tpu_custom_call.1} parent=1 // pred_check
      _
    $region27: #{tpu_custom_call.1} parent=1 // pred_check_branch
      %29 = sbr.rel (0) target = $region29
    $region28: #{tpu_custom_call.1} parent=1 // pred_region
      _
    $region29: #{tpu_custom_call.1} parent=1 // pred_fallthru
      _
    // Predicated region
    $region30: #{tpu_custom_call.1} parent=1 // pred_check
      _
    $region31: #{tpu_custom_call.1} parent=1 // pred_check_branch
      %31 = sbr.rel (0) target = $region33
    $region32: #{tpu_custom_call.1} parent=1 // pred_region
      _
    $region33: #{tpu_custom_call.1} parent=1 // pred_fallthru
      _
    // Predicated region
    $region34: #{tpu_custom_call.1} parent=1 // pred_check
      _
    $region35: #{tpu_custom_call.1} parent=1 // pred_check_branch
      %33 = sbr.rel (0) target = $region37
    $region36: #{tpu_custom_call.1} parent=1 // pred_region
      _
    $region37: #{tpu_custom_call.1} parent=1 // pred_fallthru
      _
    // Predicated region
    $region38: #{tpu_custom_call.1} parent=1 // pred_check
      _
    $region39: #{tpu_custom_call.1} parent=1 // pred_check_branch
      %35 = sbr.rel (0) target = $region41
    $region40: #{tpu_custom_call.1} parent=1 // pred_region
      _
    $region41: #{tpu_custom_call.1} parent=1 // pred_fallthru
      _
    %v36 = vld [vmem:[%s0] sm:$0xff]
    %v37 = vld [vmem:[%s0 + $0x8] sm:$0xff]
    %v38 = vld [vmem:[%s3] sm:$0xff]
    %v39 = vld [vmem:[%s3 + $0x8] sm:$0xff]
    %v40 = vld [vmem:[%s3 + $0x10] sm:$0xff]
    %v41 = vld [vmem:[%s3 + $0x18] sm:$0xff]
    %v42 = vld [vmem:[%s3 + $0x20] sm:$0xff]
    %v43 = vld [vmem:[%s3 + $0x28] sm:$0xff]
    %v44 = vld [vmem:[%s3 + $0x30] sm:$0xff]
    %v45 = vld [vmem:[%s3 + $0x38] sm:$0xff]
    %v46 = vld [vmem:[%s3 + $0x40] sm:$0xff]
    %v47 = vld [vmem:[%s3 + $0x48] sm:$0xff]
    %v48 = vld [vmem:[%s3 + $0x50] sm:$0xff]
    %v49 = vld [vmem:[%s3 + $0x58] sm:$0xff]
    %v50 = vld [vmem:[%s3 + $0x60] sm:$0xff]
    %v51 = vld [vmem:[%s3 + $0x68] sm:$0xff]
    %v52 = vld [vmem:[%s3 + $0x70] sm:$0xff]
    %v53 = vld [vmem:[%s3 + $0x78] sm:$0xff]
    %vm54 = vcmask 261120
    %v56 = vsel %vm54, %v36, 0
    %v59 = vsel %vm54, %v37, 0
    %61 = vmatpush.msra.mxu0 0.0
    %62 = vmatpush.msra.mxu0 0.0
    %63 = vmatpush.msra.mxu0 0.0
    %64 = vmatpush.msra.mxu0 0.0
    %65 = vmatpush.msra.mxu0 0.0
    %66 = vmatpush.msra.mxu0 0.0
    %67 = vmatpush.msra.mxu0 0.0
    %68 = vmatpush.msra.mxu0 0.0
    %69 = vmatpush.msra.mxu0 0.0
    %70 = vmatpush.msra.mxu0 0.0
    %71 = vmatpush.msra.mxu0 0.0
    %72 = vmatpush.msra.mxu0 0.0
    %73 = vmatpush.msra.mxu0 %v50
    %74 = vmatpush.msra.mxu0 %v46
    %75 = vmatpush.msra.mxu0 %v42
    %76 = vmatpush.msra.mxu0 %v38
    %77 = vmatmul.f32.gmra.mxu0 %v56
    %v78 = vpop.f32.mrf.mxu0
    %v79 = vadd.f32 0.0, %v78
    %80 = vmatmul.f32.gmra.mxu0 %v59
    %v81 = vpop.f32.mrf.mxu0
    %v82 = vadd.f32 0.0, %v81
    %83 = vdwg.mxu0
    %84 = vmatpush.msra.mxu0 0.0
    %85 = vmatpush.msra.mxu0 0.0
    %86 = vmatpush.msra.mxu0 0.0
    %87 = vmatpush.msra.mxu0 0.0
    %88 = vmatpush.msra.mxu0 0.0
    %89 = vmatpush.msra.mxu0 0.0
    %90 = vmatpush.msra.mxu0 0.0
    %91 = vmatpush.msra.mxu0 0.0
    %92 = vmatpush.msra.mxu0 0.0
    %93 = vmatpush.msra.mxu0 0.0
    %94 = vmatpush.msra.mxu0 0.0
    %95 = vmatpush.msra.mxu0 0.0
    %96 = vmatpush.msra.mxu0 %v51
    %97 = vmatpush.msra.mxu0 %v47
    %98 = vmatpush.msra.mxu0 %v43
    %99 = vmatpush.msra.mxu0 %v39
    %100 = vmatmul.f32.gmra.mxu0 %v56
    %v101 = vpop.f32.mrf.mxu0
    %v102 = vadd.f32 0.0, %v101
    %103 = vmatmul.f32.gmra.mxu0 %v59
    %v104 = vpop.f32.mrf.mxu0
    %v105 = vadd.f32 0.0, %v104
    %106 = vdwg.mxu0
    %107 = vmatpush.msra.mxu0 0.0
    %108 = vmatpush.msra.mxu0 0.0
    %109 = vmatpush.msra.mxu0 0.0
    %110 = vmatpush.msra.mxu0 0.0
    %111 = vmatpush.msra.mxu0 0.0
    %112 = vmatpush.msra.mxu0 0.0
    %113 = vmatpush.msra.mxu0 0.0
    %114 = vmatpush.msra.mxu0 0.0
    %115 = vmatpush.msra.mxu0 0.0
    %116 = vmatpush.msra.mxu0 0.0
    %117 = vmatpush.msra.mxu0 0.0
    %118 = vmatpush.msra.mxu0 0.0
    %119 = vmatpush.msra.mxu0 %v52
    %120 = vmatpush.msra.mxu0 %v48
    %121 = vmatpush.msra.mxu0 %v44
    %122 = vmatpush.msra.mxu0 %v40
    %123 = vmatmul.f32.gmra.mxu0 %v56
    %v124 = vpop.f32.mrf.mxu0
    %v125 = vadd.f32 0.0, %v124
    %126 = vmatmul.f32.gmra.mxu0 %v59
    %v127 = vpop.f32.mrf.mxu0
    %v128 = vadd.f32 0.0, %v127
    %129 = vdwg.mxu0
    %130 = vmatpush.msra.mxu0 0.0
    %131 = vmatpush.msra.mxu0 0.0
    %132 = vmatpush.msra.mxu0 0.0
    %133 = vmatpush.msra.mxu0 0.0
    %134 = vmatpush.msra.mxu0 0.0
    %135 = vmatpush.msra.mxu0 0.0
    %136 = vmatpush.msra.mxu0 0.0
    %137 = vmatpush.msra.mxu0 0.0
    %138 = vmatpush.msra.mxu0 0.0
    %139 = vmatpush.msra.mxu0 0.0
    %140 = vmatpush.msra.mxu0 0.0
    %141 = vmatpush.msra.mxu0 0.0
    %142 = vmatpush.msra.mxu0 %v53
    %143 = vmatpush.msra.mxu0 %v49
    %144 = vmatpush.msra.mxu0 %v45
    %145 = vmatpush.msra.mxu0 %v41
    %146 = vmatmul.f32.gmra.mxu0 %v56
    %v147 = vpop.f32.mrf.mxu0
    %v148 = vadd.f32 0.0, %v147
    %149 = vmatmul.f32.gmra.mxu0 %v59
    %v150 = vpop.f32.mrf.mxu0
    %v151 = vadd.f32 0.0, %v150
    %152 = vdwg.mxu0
    %v153 = vld [vmem:[%s1] sm:$0xff]
    %v154 = vld [vmem:[%s1 + $0x8] sm:$0xff]
    %v155 = vld [vmem:[%s4] sm:$0xff]
    %v156 = vld [vmem:[%s4 + $0x8] sm:$0xff]
    %v157 = vld [vmem:[%s4 + $0x10] sm:$0xff]
    %v158 = vld [vmem:[%s4 + $0x18] sm:$0xff]
    %v159 = vld [vmem:[%s4 + $0x20] sm:$0xff]
    %v160 = vld [vmem:[%s4 + $0x28] sm:$0xff]
    %v161 = vld [vmem:[%s4 + $0x30] sm:$0xff]
    %v162 = vld [vmem:[%s4 + $0x38] sm:$0xff]
    %v163 = vld [vmem:[%s4 + $0x40] sm:$0xff]
    %v164 = vld [vmem:[%s4 + $0x48] sm:$0xff]
    %v165 = vld [vmem:[%s4 + $0x50] sm:$0xff]
    %v166 = vld [vmem:[%s4 + $0x58] sm:$0xff]
    %v167 = vld [vmem:[%s4 + $0x60] sm:$0xff]
    %v168 = vld [vmem:[%s4 + $0x68] sm:$0xff]
    %v169 = vld [vmem:[%s4 + $0x70] sm:$0xff]
    %v170 = vld [vmem:[%s4 + $0x78] sm:$0xff]
    %v171 = vld [vmem:[%s5] sm:$0xf]
    %v173 = vperm.slane %v171, 0
    %v174 = vperm.slane %v171, 1
    %v175 = vperm.slane %v171, 2
    %v176 = vperm.slane %v171, 3
    %v182 = vsel %vm54, %v153, 0
    %v185 = vsel %vm54, %v154, 0
    %187 = vmatpush.msra.mxu0 0.0
    %188 = vmatpush.msra.mxu0 0.0
    %189 = vmatpush.msra.mxu0 0.0
    %190 = vmatpush.msra.mxu0 0.0
    %191 = vmatpush.msra.mxu0 0.0
    %192 = vmatpush.msra.mxu0 0.0
    %193 = vmatpush.msra.mxu0 0.0
    %194 = vmatpush.msra.mxu0 0.0
    %195 = vmatpush.msra.mxu0 0.0
    %196 = vmatpush.msra.mxu0 0.0
    %197 = vmatpush.msra.mxu0 0.0
    %198 = vmatpush.msra.mxu0 0.0
    %199 = vmatpush.msra.mxu0 %v167
    %200 = vmatpush.msra.mxu0 %v163
    %201 = vmatpush.msra.mxu0 %v159
    %202 = vmatpush.msra.mxu0 %v155
    %203 = vmatmul.f32.gmra.mxu0 %v182
    %v204 = vpop.f32.mrf.mxu0
    %v205 = vadd.f32 %v173, %v204
    %206 = vmatmul.f32.gmra.mxu0 %v185
    %v207 = vpop.f32.mrf.mxu0
    %v208 = vadd.f32 %v173, %v207
    %209 = vdwg.mxu0
    %210 = vmatpush.msra.mxu0 0.0
    %211 = vmatpush.msra.mxu0 0.0
    %212 = vmatpush.msra.mxu0 0.0
    %213 = vmatpush.msra.mxu0 0.0
    %214 = vmatpush.msra.mxu0 0.0
    %215 = vmatpush.msra.mxu0 0.0
    %216 = vmatpush.msra.mxu0 0.0
    %217 = vmatpush.msra.mxu0 0.0
    %218 = vmatpush.msra.mxu0 0.0
    %219 = vmatpush.msra.mxu0 0.0
    %220 = vmatpush.msra.mxu0 0.0
    %221 = vmatpush.msra.mxu0 0.0
    %222 = vmatpush.msra.mxu0 %v168
    %223 = vmatpush.msra.mxu0 %v164
    %224 = vmatpush.msra.mxu0 %v160
    %225 = vmatpush.msra.mxu0 %v156
    %226 = vmatmul.f32.gmra.mxu0 %v182
    %v227 = vpop.f32.mrf.mxu0
    %v228 = vadd.f32 %v174, %v227
    %229 = vmatmul.f32.gmra.mxu0 %v185
    %v230 = vpop.f32.mrf.mxu0
    %v231 = vadd.f32 %v174, %v230
    %232 = vdwg.mxu0
    %233 = vmatpush.msra.mxu0 0.0
    %234 = vmatpush.msra.mxu0 0.0
    %235 = vmatpush.msra.mxu0 0.0
    %236 = vmatpush.msra.mxu0 0.0
    %237 = vmatpush.msra.mxu0 0.0
    %238 = vmatpush.msra.mxu0 0.0
    %239 = vmatpush.msra.mxu0 0.0
    %240 = vmatpush.msra.mxu0 0.0
    %241 = vmatpush.msra.mxu0 0.0
    %242 = vmatpush.msra.mxu0 0.0
    %243 = vmatpush.msra.mxu0 0.0
    %244 = vmatpush.msra.mxu0 0.0
    %245 = vmatpush.msra.mxu0 %v169
    %246 = vmatpush.msra.mxu0 %v165
    %247 = vmatpush.msra.mxu0 %v161
    %248 = vmatpush.msra.mxu0 %v157
    %249 = vmatmul.f32.gmra.mxu0 %v182
    %v250 = vpop.f32.mrf.mxu0
    %v251 = vadd.f32 %v175, %v250
    %252 = vmatmul.f32.gmra.mxu0 %v185
    %v253 = vpop.f32.mrf.mxu0
    %v254 = vadd.f32 %v175, %v253
    %255 = vdwg.mxu0
    %256 = vmatpush.msra.mxu0 0.0
    %257 = vmatpush.msra.mxu0 0.0
    %258 = vmatpush.msra.mxu0 0.0
    %259 = vmatpush.msra.mxu0 0.0
    %260 = vmatpush.msra.mxu0 0.0
    %261 = vmatpush.msra.mxu0 0.0
    %262 = vmatpush.msra.mxu0 0.0
    %263 = vmatpush.msra.mxu0 0.0
    %264 = vmatpush.msra.mxu0 0.0
    %265 = vmatpush.msra.mxu0 0.0
    %266 = vmatpush.msra.mxu0 0.0
    %267 = vmatpush.msra.mxu0 0.0
    %268 = vmatpush.msra.mxu0 %v170
    %269 = vmatpush.msra.mxu0 %v166
    %270 = vmatpush.msra.mxu0 %v162
    %271 = vmatpush.msra.mxu0 %v158
    %272 = vmatmul.f32.gmra.mxu0 %v182
    %v273 = vpop.f32.mrf.mxu0
    %v274 = vadd.f32 %v176, %v273
    %275 = vmatmul.f32.gmra.mxu0 %v185
    %v276 = vpop.f32.mrf.mxu0
    %v277 = vadd.f32 %v176, %v276
    %278 = vdwg.mxu0
    %v279 = vld [vmem:[%s2] sm:$0xff]
    %v280 = vld [vmem:[%s2 + $0x8] sm:$0xff]
    %v281 = vld [vmem:[%s6] sm:$0xff]
    %v282 = vld [vmem:[%s6 + $0x8] sm:$0xff]
    %v283 = vld [vmem:[%s6 + $0x10] sm:$0xff]
    %v284 = vld [vmem:[%s6 + $0x18] sm:$0xff]
    %v285 = vld [vmem:[%s6 + $0x20] sm:$0xff]
    %v286 = vld [vmem:[%s6 + $0x28] sm:$0xff]
    %v287 = vld [vmem:[%s6 + $0x30] sm:$0xff]
    %v288 = vld [vmem:[%s6 + $0x38] sm:$0xff]
    %v289 = vld [vmem:[%s6 + $0x40] sm:$0xff]
    %v290 = vld [vmem:[%s6 + $0x48] sm:$0xff]
    %v291 = vld [vmem:[%s6 + $0x50] sm:$0xff]
    %v292 = vld [vmem:[%s6 + $0x58] sm:$0xff]
    %v293 = vld [vmem:[%s6 + $0x60] sm:$0xff]
    %v294 = vld [vmem:[%s6 + $0x68] sm:$0xff]
    %v295 = vld [vmem:[%s6 + $0x70] sm:$0xff]
    %v296 = vld [vmem:[%s6 + $0x78] sm:$0xff]
    %v297 = vld [vmem:[%s7] sm:$0xf]
    %v299 = vperm.slane %v297, 0
    %v300 = vperm.slane %v297, 1
    %v301 = vperm.slane %v297, 2
    %v302 = vperm.slane %v297, 3
    %v308 = vsel %vm54, %v279, 0
    %v311 = vsel %vm54, %v280, 0
    %313 = vmatpush.msra.mxu0 0.0
    %314 = vmatpush.msra.mxu0 0.0
    %315 = vmatpush.msra.mxu0 0.0
    %316 = vmatpush.msra.mxu0 0.0
    %317 = vmatpush.msra.mxu0 0.0
    %318 = vmatpush.msra.mxu0 0.0
    %319 = vmatpush.msra.mxu0 0.0
    %320 = vmatpush.msra.mxu0 0.0
    %321 = vmatpush.msra.mxu0 0.0
    %322 = vmatpush.msra.mxu0 0.0
    %323 = vmatpush.msra.mxu0 0.0
    %324 = vmatpush.msra.mxu0 0.0
    %325 = vmatpush.msra.mxu0 %v293
    %326 = vmatpush.msra.mxu0 %v289
    %327 = vmatpush.msra.mxu0 %v285
    %328 = vmatpush.msra.mxu0 %v281
    %329 = vmatmul.f32.gmra.mxu0 %v308
    %v330 = vpop.f32.mrf.mxu0
    %v331 = vadd.f32 %v299, %v330
    %332 = vmatmul.f32.gmra.mxu0 %v311
    %v333 = vpop.f32.mrf.mxu0
    %v334 = vadd.f32 %v299, %v333
    %335 = vdwg.mxu0
    %336 = vmatpush.msra.mxu0 0.0
    %337 = vmatpush.msra.mxu0 0.0
    %338 = vmatpush.msra.mxu0 0.0
    %339 = vmatpush.msra.mxu0 0.0
    %340 = vmatpush.msra.mxu0 0.0
    %341 = vmatpush.msra.mxu0 0.0
    %342 = vmatpush.msra.mxu0 0.0
    %343 = vmatpush.msra.mxu0 0.0
    %344 = vmatpush.msra.mxu0 0.0
    %345 = vmatpush.msra.mxu0 0.0
    %346 = vmatpush.msra.mxu0 0.0
    %347 = vmatpush.msra.mxu0 0.0
    %348 = vmatpush.msra.mxu0 %v294
    %349 = vmatpush.msra.mxu0 %v290
    %350 = vmatpush.msra.mxu0 %v286
    %351 = vmatpush.msra.mxu0 %v282
    %352 = vmatmul.f32.gmra.mxu0 %v308
    %v353 = vpop.f32.mrf.mxu0
    %v354 = vadd.f32 %v300, %v353
    %355 = vmatmul.f32.gmra.mxu0 %v311
    %v356 = vpop.f32.mrf.mxu0
    %v357 = vadd.f32 %v300, %v356
    %358 = vdwg.mxu0
    %359 = vmatpush.msra.mxu0 0.0
    %360 = vmatpush.msra.mxu0 0.0
    %361 = vmatpush.msra.mxu0 0.0
    %362 = vmatpush.msra.mxu0 0.0
    %363 = vmatpush.msra.mxu0 0.0
    %364 = vmatpush.msra.mxu0 0.0
    %365 = vmatpush.msra.mxu0 0.0
    %366 = vmatpush.msra.mxu0 0.0
    %367 = vmatpush.msra.mxu0 0.0
    %368 = vmatpush.msra.mxu0 0.0
    %369 = vmatpush.msra.mxu0 0.0
    %370 = vmatpush.msra.mxu0 0.0
    %371 = vmatpush.msra.mxu0 %v295
    %372 = vmatpush.msra.mxu0 %v291
    %373 = vmatpush.msra.mxu0 %v287
    %374 = vmatpush.msra.mxu0 %v283
    %375 = vmatmul.f32.gmra.mxu0 %v308
    %v376 = vpop.f32.mrf.mxu0
    %v377 = vadd.f32 %v301, %v376
    %378 = vmatmul.f32.gmra.mxu0 %v311
    %v379 = vpop.f32.mrf.mxu0
    %v380 = vadd.f32 %v301, %v379
    %381 = vdwg.mxu0
    %382 = vmatpush.msra.mxu0 0.0
    %383 = vmatpush.msra.mxu0 0.0
    %384 = vmatpush.msra.mxu0 0.0
    %385 = vmatpush.msra.mxu0 0.0
    %386 = vmatpush.msra.mxu0 0.0
    %387 = vmatpush.msra.mxu0 0.0
    %388 = vmatpush.msra.mxu0 0.0
    %389 = vmatpush.msra.mxu0 0.0
    %390 = vmatpush.msra.mxu0 0.0
    %391 = vmatpush.msra.mxu0 0.0
    %392 = vmatpush.msra.mxu0 0.0
    %393 = vmatpush.msra.mxu0 0.0
    %394 = vmatpush.msra.mxu0 %v296
    %395 = vmatpush.msra.mxu0 %v292
    %396 = vmatpush.msra.mxu0 %v288
    %397 = vmatpush.msra.mxu0 %v284
    %398 = vmatmul.f32.gmra.mxu0 %v308
    %v399 = vpop.f32.mrf.mxu0
    %v400 = vadd.f32 %v302, %v399
    %401 = vmatmul.f32.gmra.mxu0 %v311
    %v402 = vpop.f32.mrf.mxu0
    %v403 = vadd.f32 %v302, %v402
    %404 = vdwg.mxu0
    %405 = vmatpush.xpose.msra.mxu0 0.0
    %406 = vmatpush.xpose.msra.mxu0 0.0
    %407 = vmatpush.xpose.msra.mxu0 0.0
    %408 = vmatpush.xpose.msra.mxu0 0.0
    %409 = vmatpush.xpose.msra.mxu0 0.0
    %410 = vmatpush.xpose.msra.mxu0 0.0
    %411 = vmatpush.xpose.msra.mxu0 0.0
    %412 = vmatpush.xpose.msra.mxu0 0.0
    %413 = vmatpush.xpose.msra.mxu0 0.0
    %414 = vmatpush.xpose.msra.mxu0 0.0
    %415 = vmatpush.xpose.msra.mxu0 0.0
    %416 = vmatpush.xpose.msra.mxu0 0.0
    %417 = vmatpush.xpose.msra.mxu0 0.0
    %418 = vmatpush.xpose.msra.mxu0 0.0
    %419 = vmatpush.xpose.msra.mxu0 0.0
    %420 = vmatpush.xpose.msra.mxu0 %v205
    %421 = vmatmul.f32.gmra.mxu0 %v79
    %v422 = vpop.f32.mrf.mxu0
    %v423 = vadd.f32 0.0, %v422
    %424 = vdwg.mxu0
    %425 = vmatpush.xpose.msra.mxu0 0.0
    %426 = vmatpush.xpose.msra.mxu0 0.0
    %427 = vmatpush.xpose.msra.mxu0 0.0
    %428 = vmatpush.xpose.msra.mxu0 0.0
    %429 = vmatpush.xpose.msra.mxu0 0.0
    %430 = vmatpush.xpose.msra.mxu0 0.0
    %431 = vmatpush.xpose.msra.mxu0 0.0
    %432 = vmatpush.xpose.msra.mxu0 0.0
    %433 = vmatpush.xpose.msra.mxu0 0.0
    %434 = vmatpush.xpose.msra.mxu0 0.0
    %435 = vmatpush.xpose.msra.mxu0 0.0
    %436 = vmatpush.xpose.msra.mxu0 0.0
    %437 = vmatpush.xpose.msra.mxu0 0.0
    %438 = vmatpush.xpose.msra.mxu0 0.0
    %439 = vmatpush.xpose.msra.mxu0 0.0
    %440 = vmatpush.xpose.msra.mxu0 %v208
    %441 = vmatmul.f32.gmra.mxu0 %v82
    %v442 = vpop.f32.mrf.mxu0
    %v443 = vadd.f32 0.0, %v442
    %444 = vdwg.mxu0
    %vm445 = vcmask 64512
    %v446 = vsel %vm445, %v423, -inf
    %447 = vmax.xlane.f32.xlu0 %v446
    %v448 = vpop.xlane.xlu0 %447
    %v449 = vsel %vm445, %v443, -inf
    %450 = vmax.xlane.f32.xlu0 %v449
    %v451 = vpop.xlane.xlu0 %450
    %v452 = vsub.f32 %v423, %v448
    %v453 = vsub.f32 %v443, %v451
    %v454 = vmul.f32 %v452, 1.442695
    %v455 = vpow.pop %v454
    %v456 = vmul.f32 %v453, 1.442695
    %v457 = vpow.pop %v456
    %v458 = vsel %vm445, %v455, 0.0
    %459 = vadd.xlane.f32.xlu0 %v458
    %v460 = vpop.xlane.xlu0 %459
    %v461 = vsel %vm445, %v457, 0.0
    %462 = vadd.xlane.f32.xlu0 %v461
    %v463 = vpop.xlane.xlu0 %462
    %v465 = vsel %vm445, %v455, 0
    %467 = vmatpush.msra.mxu0 0.0
    %468 = vmatpush.msra.mxu0 0.0
    %469 = vmatpush.msra.mxu0 0.0
    %470 = vmatpush.msra.mxu0 0.0
    %471 = vmatpush.msra.mxu0 0.0
    %472 = vmatpush.msra.mxu0 0.0
    %473 = vmatpush.msra.mxu0 0.0
    %474 = vmatpush.msra.mxu0 0.0
    %475 = vmatpush.msra.mxu0 0.0
    %476 = vmatpush.msra.mxu0 0.0
    %477 = vmatpush.msra.mxu0 0.0
    %478 = vmatpush.msra.mxu0 0.0
    %479 = vmatpush.msra.mxu0 0.0
    %480 = vmatpush.msra.mxu0 0.0
    %481 = vmatpush.msra.mxu0 0.0
    %482 = vmatpush.msra.mxu0 %v331
    %483 = vmatmul.f32.gmra.mxu0 %v465
    %v484 = vpop.f32.mrf.mxu0
    %v485 = vadd.f32 0.0, %v484
    %486 = vdwg.mxu0
    %v488 = vsel %vm445, %v457, 0
    %490 = vmatpush.msra.mxu0 0.0
    %491 = vmatpush.msra.mxu0 0.0
    %492 = vmatpush.msra.mxu0 0.0
    %493 = vmatpush.msra.mxu0 0.0
    %494 = vmatpush.msra.mxu0 0.0
    %495 = vmatpush.msra.mxu0 0.0
    %496 = vmatpush.msra.mxu0 0.0
    %497 = vmatpush.msra.mxu0 0.0
    %498 = vmatpush.msra.mxu0 0.0
    %499 = vmatpush.msra.mxu0 0.0
    %500 = vmatpush.msra.mxu0 0.0
    %501 = vmatpush.msra.mxu0 0.0
    %502 = vmatpush.msra.mxu0 0.0
    %503 = vmatpush.msra.mxu0 0.0
    %504 = vmatpush.msra.mxu0 0.0
    %505 = vmatpush.msra.mxu0 %v334
    %506 = vmatmul.f32.gmra.mxu0 %v488
    %v507 = vpop.f32.mrf.mxu0
    %v508 = vadd.f32 0.0, %v507
    %509 = vdwg.mxu0
    %v510 = vrcp.pop %v460
    %v511 = vmul.f32 %v460, %v510
    %v512 = vsub.f32 1.0, %v511
    %v513 = vmul.f32 %v510, %v512
    %v514 = vadd.f32 %v510, %v513
    %vm515 = vweird.f32 %v460
    %vm516 = vweird.f32 %v510
    %vm517 = vmor %vm515, %vm516
    %v518 = vsel %vm517, %v510, %v514
    %v519 = vand.u32 2147483647, %v460
    %vm520 = vcmp.eq.f32.partialorder %v519, 8.507059e+37
    %v521 = vand.u32 %v460, 2147483648
    %v522 = vor.u32 1.1754944e-38, %v521
    %v523 = vsel %vm520, %v522, %v518
    %v524 = vrcp.pop %v463
    %v525 = vmul.f32 %v463, %v524
    %v526 = vsub.f32 1.0, %v525
    %v527 = vmul.f32 %v524, %v526
    %v528 = vadd.f32 %v524, %v527
    %vm529 = vweird.f32 %v463
    %vm530 = vweird.f32 %v524
    %vm531 = vmor %vm529, %vm530
    %v532 = vsel %vm531, %v524, %v528
    %v533 = vand.u32 2147483647, %v463
    %vm534 = vcmp.eq.f32.partialorder %v533, 8.507059e+37
    %v535 = vand.u32 %v463, 2147483648
    %v536 = vor.u32 1.1754944e-38, %v535
    %v537 = vsel %vm534, %v536, %v532
    %v538 = vmul.f32 %v485, %v523
    %v539 = vmul.f32 %v508, %v537
    %v540 = vld [vmem:[%s8] sm:$0xff]
    %v541 = vld [vmem:[%s8 + $0x8] sm:$0xff]
    %v542 = vld [vmem:[%s8 + $0x10] sm:$0xff]
    %v543 = vld [vmem:[%s8 + $0x18] sm:$0xff]
    %v544 = vld [vmem:[%s8 + $0x20] sm:$0xff]
    %v545 = vld [vmem:[%s8 + $0x28] sm:$0xff]
    %v546 = vld [vmem:[%s8 + $0x30] sm:$0xff]
    %v547 = vld [vmem:[%s8 + $0x38] sm:$0xff]
    %v548 = vld [vmem:[%s8 + $0x40] sm:$0xff]
    %v549 = vld [vmem:[%s8 + $0x48] sm:$0xff]
    %v550 = vld [vmem:[%s8 + $0x50] sm:$0xff]
    %v551 = vld [vmem:[%s8 + $0x58] sm:$0xff]
    %v552 = vld [vmem:[%s8 + $0x60] sm:$0xff]
    %v553 = vld [vmem:[%s8 + $0x68] sm:$0xff]
    %v554 = vld [vmem:[%s8 + $0x70] sm:$0xff]
    %v555 = vld [vmem:[%s8 + $0x78] sm:$0xff]
    %556 = vmatpush.xpose.msra.mxu0 0.0
    %557 = vmatpush.xpose.msra.mxu0 0.0
    %558 = vmatpush.xpose.msra.mxu0 0.0
    %559 = vmatpush.xpose.msra.mxu0 0.0
    %560 = vmatpush.xpose.msra.mxu0 0.0
    %561 = vmatpush.xpose.msra.mxu0 0.0
    %562 = vmatpush.xpose.msra.mxu0 0.0
    %563 = vmatpush.xpose.msra.mxu0 0.0
    %564 = vmatpush.xpose.msra.mxu0 0.0
    %565 = vmatpush.xpose.msra.mxu0 0.0
    %566 = vmatpush.xpose.msra.mxu0 0.0
    %567 = vmatpush.xpose.msra.mxu0 0.0
    %568 = vmatpush.xpose.msra.mxu0 0.0
    %569 = vmatpush.xpose.msra.mxu0 0.0
    %570 = vmatpush.xpose.msra.mxu0 0.0
    %571 = vmatpush.xpose.msra.mxu0 %v228
    %572 = vmatmul.f32.gmra.mxu0 %v102
    %v573 = vpop.f32.mrf.mxu0
    %v574 = vadd.f32 0.0, %v573
    %575 = vdwg.mxu0
    %576 = vmatpush.xpose.msra.mxu0 0.0
    %577 = vmatpush.xpose.msra.mxu0 0.0
    %578 = vmatpush.xpose.msra.mxu0 0.0
    %579 = vmatpush.xpose.msra.mxu0 0.0
    %580 = vmatpush.xpose.msra.mxu0 0.0
    %581 = vmatpush.xpose.msra.mxu0 0.0
    %582 = vmatpush.xpose.msra.mxu0 0.0
    %583 = vmatpush.xpose.msra.mxu0 0.0
    %584 = vmatpush.xpose.msra.mxu0 0.0
    %585 = vmatpush.xpose.msra.mxu0 0.0
    %586 = vmatpush.xpose.msra.mxu0 0.0
    %587 = vmatpush.xpose.msra.mxu0 0.0
    %588 = vmatpush.xpose.msra.mxu0 0.0
    %589 = vmatpush.xpose.msra.mxu0 0.0
    %590 = vmatpush.xpose.msra.mxu0 0.0
    %591 = vmatpush.xpose.msra.mxu0 %v231
    %592 = vmatmul.f32.gmra.mxu0 %v105
    %v593 = vpop.f32.mrf.mxu0
    %v594 = vadd.f32 0.0, %v593
    %595 = vdwg.mxu0
    %v596 = vsel %vm445, %v574, -inf
    %597 = vmax.xlane.f32.xlu0 %v596
    %v598 = vpop.xlane.xlu0 %597
    %v599 = vsel %vm445, %v594, -inf
    %600 = vmax.xlane.f32.xlu0 %v599
    %v601 = vpop.xlane.xlu0 %600
    %v602 = vsub.f32 %v574, %v598
    %v603 = vsub.f32 %v594, %v601
    %v604 = vmul.f32 %v602, 1.442695
    %v605 = vpow.pop %v604
    %v606 = vmul.f32 %v603, 1.442695
    %v607 = vpow.pop %v606
    %v608 = vsel %vm445, %v605, 0.0
    %609 = vadd.xlane.f32.xlu0 %v608
    %v610 = vpop.xlane.xlu0 %609
    %v611 = vsel %vm445, %v607, 0.0
    %612 = vadd.xlane.f32.xlu0 %v611
    %v613 = vpop.xlane.xlu0 %612
    %v615 = vsel %vm445, %v605, 0
    %617 = vmatpush.msra.mxu0 0.0
    %618 = vmatpush.msra.mxu0 0.0
    %619 = vmatpush.msra.mxu0 0.0
    %620 = vmatpush.msra.mxu0 0.0
    %621 = vmatpush.msra.mxu0 0.0
    %622 = vmatpush.msra.mxu0 0.0
    %623 = vmatpush.msra.mxu0 0.0
    %624 = vmatpush.msra.mxu0 0.0
    %625 = vmatpush.msra.mxu0 0.0
    %626 = vmatpush.msra.mxu0 0.0
    %627 = vmatpush.msra.mxu0 0.0
    %628 = vmatpush.msra.mxu0 0.0
    %629 = vmatpush.msra.mxu0 0.0
    %630 = vmatpush.msra.mxu0 0.0
    %631 = vmatpush.msra.mxu0 0.0
    %632 = vmatpush.msra.mxu0 %v354
    %633 = vmatmul.f32.gmra.mxu0 %v615
    %v634 = vpop.f32.mrf.mxu0
    %v635 = vadd.f32 0.0, %v634
    %636 = vdwg.mxu0
    %v638 = vsel %vm445, %v607, 0
    %640 = vmatpush.msra.mxu0 0.0
    %641 = vmatpush.msra.mxu0 0.0
    %642 = vmatpush.msra.mxu0 0.0
    %643 = vmatpush.msra.mxu0 0.0
    %644 = vmatpush.msra.mxu0 0.0
    %645 = vmatpush.msra.mxu0 0.0
    %646 = vmatpush.msra.mxu0 0.0
    %647 = vmatpush.msra.mxu0 0.0
    %648 = vmatpush.msra.mxu0 0.0
    %649 = vmatpush.msra.mxu0 0.0
    %650 = vmatpush.msra.mxu0 0.0
    %651 = vmatpush.msra.mxu0 0.0
    %652 = vmatpush.msra.mxu0 0.0
    %653 = vmatpush.msra.mxu0 0.0
    %654 = vmatpush.msra.mxu0 0.0
    %655 = vmatpush.msra.mxu0 %v357
    %656 = vmatmul.f32.gmra.mxu0 %v638
    %v657 = vpop.f32.mrf.mxu0
    %v658 = vadd.f32 0.0, %v657
    %659 = vdwg.mxu0
    %v660 = vrcp.pop %v610
    %v661 = vmul.f32 %v610, %v660
    %v662 = vsub.f32 1.0, %v661
    %v663 = vmul.f32 %v660, %v662
    %v664 = vadd.f32 %v660, %v663
    %vm665 = vweird.f32 %v610
    %vm666 = vweird.f32 %v660
    %vm667 = vmor %vm665, %vm666
    %v668 = vsel %vm667, %v660, %v664
    %v669 = vand.u32 2147483647, %v610
    %vm670 = vcmp.eq.f32.partialorder %v669, 8.507059e+37
    %v671 = vand.u32 %v610, 2147483648
    %v672 = vor.u32 1.1754944e-38, %v671
    %v673 = vsel %vm670, %v672, %v668
    %v674 = vrcp.pop %v613
    %v675 = vmul.f32 %v613, %v674
    %v676 = vsub.f32 1.0, %v675
    %v677 = vmul.f32 %v674, %v676
    %v678 = vadd.f32 %v674, %v677
    %vm679 = vweird.f32 %v613
    %vm680 = vweird.f32 %v674
    %vm681 = vmor %vm679, %vm680
    %v682 = vsel %vm681, %v674, %v678
    %v683 = vand.u32 2147483647, %v613
    %vm684 = vcmp.eq.f32.partialorder %v683, 8.507059e+37
    %v685 = vand.u32 %v613, 2147483648
    %v686 = vor.u32 1.1754944e-38, %v685
    %v687 = vsel %vm684, %v686, %v682
    %v688 = vmul.f32 %v635, %v673
    %v689 = vmul.f32 %v658, %v687
    %v690 = vld [vmem:[%s8 + $0x80] sm:$0xff]
    %v691 = vld [vmem:[%s8 + $0x88] sm:$0xff]
    %v692 = vld [vmem:[%s8 + $0x90] sm:$0xff]
    %v693 = vld [vmem:[%s8 + $0x98] sm:$0xff]
    %v694 = vld [vmem:[%s8 + $0xa0] sm:$0xff]
    %v695 = vld [vmem:[%s8 + $0xa8] sm:$0xff]
    %v696 = vld [vmem:[%s8 + $0xb0] sm:$0xff]
    %v697 = vld [vmem:[%s8 + $0xb8] sm:$0xff]
    %v698 = vld [vmem:[%s8 + $0xc0] sm:$0xff]
    %v699 = vld [vmem:[%s8 + $0xc8] sm:$0xff]
    %v700 = vld [vmem:[%s8 + $0xd0] sm:$0xff]
    %v701 = vld [vmem:[%s8 + $0xd8] sm:$0xff]
    %v702 = vld [vmem:[%s8 + $0xe0] sm:$0xff]
    %v703 = vld [vmem:[%s8 + $0xe8] sm:$0xff]
    %v704 = vld [vmem:[%s8 + $0xf0] sm:$0xff]
    %v705 = vld [vmem:[%s8 + $0xf8] sm:$0xff]
    %706 = vmatpush.msra.mxu0 %v705
    %707 = vmatpush.msra.mxu0 %v704
    %708 = vmatpush.msra.mxu0 %v703
    %709 = vmatpush.msra.mxu0 %v702
    %710 = vmatpush.msra.mxu0 %v701
    %711 = vmatpush.msra.mxu0 %v700
    %712 = vmatpush.msra.mxu0 %v699
    %713 = vmatpush.msra.mxu0 %v698
    %714 = vmatpush.msra.mxu0 %v697
    %715 = vmatpush.msra.mxu0 %v696
    %716 = vmatpush.msra.mxu0 %v695
    %717 = vmatpush.msra.mxu0 %v694
    %718 = vmatpush.msra.mxu0 %v693
    %719 = vmatpush.msra.mxu0 %v692
    %720 = vmatpush.msra.mxu0 %v691
    %721 = vmatpush.msra.mxu0 %v690
    %722 = vmatmul.f32.gmra.mxu0 %v688
    %v723 = vpop.f32.mrf.mxu0
    %v724 = vadd.f32 0.0, %v723
    %725 = vmatmul.f32.gmra.mxu0 %v689
    %v726 = vpop.f32.mrf.mxu0
    %v727 = vadd.f32 0.0, %v726
    %728 = vdwg.mxu0
    %729 = vmatpush.msra.mxu0 %v555
    %730 = vmatpush.msra.mxu0 %v554
    %731 = vmatpush.msra.mxu0 %v553
    %732 = vmatpush.msra.mxu0 %v552
    %733 = vmatpush.msra.mxu0 %v551
    %734 = vmatpush.msra.mxu0 %v550
    %735 = vmatpush.msra.mxu0 %v549
    %736 = vmatpush.msra.mxu0 %v548
    %737 = vmatpush.msra.mxu0 %v547
    %738 = vmatpush.msra.mxu0 %v546
    %739 = vmatpush.msra.mxu0 %v545
    %740 = vmatpush.msra.mxu0 %v544
    %741 = vmatpush.msra.mxu0 %v543
    %742 = vmatpush.msra.mxu0 %v542
    %743 = vmatpush.msra.mxu0 %v541
    %744 = vmatpush.msra.mxu0 %v540
    %745 = vmatmul.f32.gmra.mxu0 %v538
    %v746 = vpop.f32.mrf.mxu0
    %v747 = vadd.f32 %v724, %v746
    %748 = vmatmul.f32.gmra.mxu0 %v539
    %v749 = vpop.f32.mrf.mxu0
    %v750 = vadd.f32 %v727, %v749
    %751 = vdwg.mxu0
    %752 = vmatpush.xpose.msra.mxu0 0.0
    %753 = vmatpush.xpose.msra.mxu0 0.0
    %754 = vmatpush.xpose.msra.mxu0 0.0
    %755 = vmatpush.xpose.msra.mxu0 0.0
    %756 = vmatpush.xpose.msra.mxu0 0.0
    %757 = vmatpush.xpose.msra.mxu0 0.0
    %758 = vmatpush.xpose.msra.mxu0 0.0
    %759 = vmatpush.xpose.msra.mxu0 0.0
    %760 = vmatpush.xpose.msra.mxu0 0.0
    %761 = vmatpush.xpose.msra.mxu0 0.0
    %762 = vmatpush.xpose.msra.mxu0 0.0
    %763 = vmatpush.xpose.msra.mxu0 0.0
    %764 = vmatpush.xpose.msra.mxu0 0.0
    %765 = vmatpush.xpose.msra.mxu0 0.0
    %766 = vmatpush.xpose.msra.mxu0 0.0
    %767 = vmatpush.xpose.msra.mxu0 %v251
    %768 = vmatmul.f32.gmra.mxu0 %v125
    %v769 = vpop.f32.mrf.mxu0
    %v770 = vadd.f32 0.0, %v769
    %771 = vdwg.mxu0
    %772 = vmatpush.xpose.msra.mxu0 0.0
    %773 = vmatpush.xpose.msra.mxu0 0.0
    %774 = vmatpush.xpose.msra.mxu0 0.0
    %775 = vmatpush.xpose.msra.mxu0 0.0
    %776 = vmatpush.xpose.msra.mxu0 0.0
    %777 = vmatpush.xpose.msra.mxu0 0.0
    %778 = vmatpush.xpose.msra.mxu0 0.0
    %779 = vmatpush.xpose.msra.mxu0 0.0
    %780 = vmatpush.xpose.msra.mxu0 0.0
    %781 = vmatpush.xpose.msra.mxu0 0.0
    %782 = vmatpush.xpose.msra.mxu0 0.0
    %783 = vmatpush.xpose.msra.mxu0 0.0
    %784 = vmatpush.xpose.msra.mxu0 0.0
    %785 = vmatpush.xpose.msra.mxu0 0.0
    %786 = vmatpush.xpose.msra.mxu0 0.0
    %787 = vmatpush.xpose.msra.mxu0 %v254
    %788 = vmatmul.f32.gmra.mxu0 %v128
    %v789 = vpop.f32.mrf.mxu0
    %v790 = vadd.f32 0.0, %v789
    %791 = vdwg.mxu0
    %v792 = vsel %vm445, %v770, -inf
    %793 = vmax.xlane.f32.xlu0 %v792
    %v794 = vpop.xlane.xlu0 %793
    %v795 = vsel %vm445, %v790, -inf
    %796 = vmax.xlane.f32.xlu0 %v795
    %v797 = vpop.xlane.xlu0 %796
    %v798 = vsub.f32 %v770, %v794
    %v799 = vsub.f32 %v790, %v797
    %v800 = vmul.f32 %v798, 1.442695
    %v801 = vpow.pop %v800
    %v802 = vmul.f32 %v799, 1.442695
    %v803 = vpow.pop %v802
    %v804 = vsel %vm445, %v801, 0.0
    %805 = vadd.xlane.f32.xlu0 %v804
    %v806 = vpop.xlane.xlu0 %805
    %v807 = vsel %vm445, %v803, 0.0
    %808 = vadd.xlane.f32.xlu0 %v807
    %v809 = vpop.xlane.xlu0 %808
    %v811 = vsel %vm445, %v801, 0
    %813 = vmatpush.msra.mxu0 0.0
    %814 = vmatpush.msra.mxu0 0.0
    %815 = vmatpush.msra.mxu0 0.0
    %816 = vmatpush.msra.mxu0 0.0
    %817 = vmatpush.msra.mxu0 0.0
    %818 = vmatpush.msra.mxu0 0.0
    %819 = vmatpush.msra.mxu0 0.0
    %820 = vmatpush.msra.mxu0 0.0
    %821 = vmatpush.msra.mxu0 0.0
    %822 = vmatpush.msra.mxu0 0.0
    %823 = vmatpush.msra.mxu0 0.0
    %824 = vmatpush.msra.mxu0 0.0
    %825 = vmatpush.msra.mxu0 0.0
    %826 = vmatpush.msra.mxu0 0.0
    %827 = vmatpush.msra.mxu0 0.0
    %828 = vmatpush.msra.mxu0 %v377
    %829 = vmatmul.f32.gmra.mxu0 %v811
    %v830 = vpop.f32.mrf.mxu0
    %v831 = vadd.f32 0.0, %v830
    %832 = vdwg.mxu0
    %v834 = vsel %vm445, %v803, 0
    %836 = vmatpush.msra.mxu0 0.0
    %837 = vmatpush.msra.mxu0 0.0
    %838 = vmatpush.msra.mxu0 0.0
    %839 = vmatpush.msra.mxu0 0.0
    %840 = vmatpush.msra.mxu0 0.0
    %841 = vmatpush.msra.mxu0 0.0
    %842 = vmatpush.msra.mxu0 0.0
    %843 = vmatpush.msra.mxu0 0.0
    %844 = vmatpush.msra.mxu0 0.0
    %845 = vmatpush.msra.mxu0 0.0
    %846 = vmatpush.msra.mxu0 0.0
    %847 = vmatpush.msra.mxu0 0.0
    %848 = vmatpush.msra.mxu0 0.0
    %849 = vmatpush.msra.mxu0 0.0
    %850 = vmatpush.msra.mxu0 0.0
    %851 = vmatpush.msra.mxu0 %v380
    %852 = vmatmul.f32.gmra.mxu0 %v834
    %v853 = vpop.f32.mrf.mxu0
    %v854 = vadd.f32 0.0, %v853
    %855 = vdwg.mxu0
    %v856 = vrcp.pop %v806
    %v857 = vmul.f32 %v806, %v856
    %v858 = vsub.f32 1.0, %v857
    %v859 = vmul.f32 %v856, %v858
    %v860 = vadd.f32 %v856, %v859
    %vm861 = vweird.f32 %v806
    %vm862 = vweird.f32 %v856
    %vm863 = vmor %vm861, %vm862
    %v864 = vsel %vm863, %v856, %v860
    %v865 = vand.u32 2147483647, %v806
    %vm866 = vcmp.eq.f32.partialorder %v865, 8.507059e+37
    %v867 = vand.u32 %v806, 2147483648
    %v868 = vor.u32 1.1754944e-38, %v867
    %v869 = vsel %vm866, %v868, %v864
    %v870 = vrcp.pop %v809
    %v871 = vmul.f32 %v809, %v870
    %v872 = vsub.f32 1.0, %v871
    %v873 = vmul.f32 %v870, %v872
    %v874 = vadd.f32 %v870, %v873
    %vm875 = vweird.f32 %v809
    %vm876 = vweird.f32 %v870
    %vm877 = vmor %vm875, %vm876
    %v878 = vsel %vm877, %v870, %v874
    %v879 = vand.u32 2147483647, %v809
    %vm880 = vcmp.eq.f32.partialorder %v879, 8.507059e+37
    %v881 = vand.u32 %v809, 2147483648
    %v882 = vor.u32 1.1754944e-38, %v881
    %v883 = vsel %vm880, %v882, %v878
    %v884 = vmul.f32 %v831, %v869
    %v885 = vmul.f32 %v854, %v883
    %v886 = vld [vmem:[%s8 + $0x100] sm:$0xff]
    %v887 = vld [vmem:[%s8 + $0x108] sm:$0xff]
    %v888 = vld [vmem:[%s8 + $0x110] sm:$0xff]
    %v889 = vld [vmem:[%s8 + $0x118] sm:$0xff]
    %v890 = vld [vmem:[%s8 + $0x120] sm:$0xff]
    %v891 = vld [vmem:[%s8 + $0x128] sm:$0xff]
    %v892 = vld [vmem:[%s8 + $0x130] sm:$0xff]
    %v893 = vld [vmem:[%s8 + $0x138] sm:$0xff]
    %v894 = vld [vmem:[%s8 + $0x140] sm:$0xff]
    %v895 = vld [vmem:[%s8 + $0x148] sm:$0xff]
    %v896 = vld [vmem:[%s8 + $0x150] sm:$0xff]
    %v897 = vld [vmem:[%s8 + $0x158] sm:$0xff]
    %v898 = vld [vmem:[%s8 + $0x160] sm:$0xff]
    %v899 = vld [vmem:[%s8 + $0x168] sm:$0xff]
    %v900 = vld [vmem:[%s8 + $0x170] sm:$0xff]
    %v901 = vld [vmem:[%s8 + $0x178] sm:$0xff]
    %902 = vmatpush.msra.mxu0 %v901
    %903 = vmatpush.msra.mxu0 %v900
    %904 = vmatpush.msra.mxu0 %v899
    %905 = vmatpush.msra.mxu0 %v898
    %906 = vmatpush.msra.mxu0 %v897
    %907 = vmatpush.msra.mxu0 %v896
    %908 = vmatpush.msra.mxu0 %v895
    %909 = vmatpush.msra.mxu0 %v894
    %910 = vmatpush.msra.mxu0 %v893
    %911 = vmatpush.msra.mxu0 %v892
    %912 = vmatpush.msra.mxu0 %v891
    %913 = vmatpush.msra.mxu0 %v890
    %914 = vmatpush.msra.mxu0 %v889
    %915 = vmatpush.msra.mxu0 %v888
    %916 = vmatpush.msra.mxu0 %v887
    %917 = vmatpush.msra.mxu0 %v886
    %918 = vmatmul.f32.gmra.mxu0 %v884
    %v919 = vpop.f32.mrf.mxu0
    %v920 = vadd.f32 0.0, %v919
    %921 = vmatmul.f32.gmra.mxu0 %v885
    %v922 = vpop.f32.mrf.mxu0
    %v923 = vadd.f32 0.0, %v922
    %924 = vdwg.mxu0
    %v925 = vadd.f32 %v747, %v920
    %v926 = vadd.f32 %v750, %v923
    %927 = vmatpush.xpose.msra.mxu0 0.0
    %928 = vmatpush.xpose.msra.mxu0 0.0
    %929 = vmatpush.xpose.msra.mxu0 0.0
    %930 = vmatpush.xpose.msra.mxu0 0.0
    %931 = vmatpush.xpose.msra.mxu0 0.0
    %932 = vmatpush.xpose.msra.mxu0 0.0
    %933 = vmatpush.xpose.msra.mxu0 0.0
    %934 = vmatpush.xpose.msra.mxu0 0.0
    %935 = vmatpush.xpose.msra.mxu0 0.0
    %936 = vmatpush.xpose.msra.mxu0 0.0
    %937 = vmatpush.xpose.msra.mxu0 0.0
    %938 = vmatpush.xpose.msra.mxu0 0.0
    %939 = vmatpush.xpose.msra.mxu0 0.0
    %940 = vmatpush.xpose.msra.mxu0 0.0
    %941 = vmatpush.xpose.msra.mxu0 0.0
    %942 = vmatpush.xpose.msra.mxu0 %v274
    %943 = vmatmul.f32.gmra.mxu0 %v148
    %v944 = vpop.f32.mrf.mxu0
    %v945 = vadd.f32 0.0, %v944
    %946 = vdwg.mxu0
    %947 = vmatpush.xpose.msra.mxu0 0.0
    %948 = vmatpush.xpose.msra.mxu0 0.0
    %949 = vmatpush.xpose.msra.mxu0 0.0
    %950 = vmatpush.xpose.msra.mxu0 0.0
    %951 = vmatpush.xpose.msra.mxu0 0.0
    %952 = vmatpush.xpose.msra.mxu0 0.0
    %953 = vmatpush.xpose.msra.mxu0 0.0
    %954 = vmatpush.xpose.msra.mxu0 0.0
    %955 = vmatpush.xpose.msra.mxu0 0.0
    %956 = vmatpush.xpose.msra.mxu0 0.0
    %957 = vmatpush.xpose.msra.mxu0 0.0
    %958 = vmatpush.xpose.msra.mxu0 0.0
    %959 = vmatpush.xpose.msra.mxu0 0.0
    %960 = vmatpush.xpose.msra.mxu0 0.0
    %961 = vmatpush.xpose.msra.mxu0 0.0
    %962 = vmatpush.xpose.msra.mxu0 %v277
    %963 = vmatmul.f32.gmra.mxu0 %v151
    %v964 = vpop.f32.mrf.mxu0
    %v965 = vadd.f32 0.0, %v964
    %966 = vdwg.mxu0
    %v967 = vsel %vm445, %v945, -inf
    %968 = vmax.xlane.f32.xlu0 %v967
    %v969 = vpop.xlane.xlu0 %968
    %v970 = vsel %vm445, %v965, -inf
    %971 = vmax.xlane.f32.xlu0 %v970
    %v972 = vpop.xlane.xlu0 %971
    %v973 = vsub.f32 %v945, %v969
    %v974 = vsub.f32 %v965, %v972
    %v975 = vmul.f32 %v973, 1.442695
    %v976 = vpow.pop %v975
    %v977 = vmul.f32 %v974, 1.442695
    %v978 = vpow.pop %v977
    %v979 = vsel %vm445, %v976, 0.0
    %980 = vadd.xlane.f32.xlu0 %v979
    %v981 = vpop.xlane.xlu0 %980
    %v982 = vsel %vm445, %v978, 0.0
    %983 = vadd.xlane.f32.xlu0 %v982
    %v984 = vpop.xlane.xlu0 %983
    %v986 = vsel %vm445, %v976, 0
    %988 = vmatpush.msra.mxu0 0.0
    %989 = vmatpush.msra.mxu0 0.0
    %990 = vmatpush.msra.mxu0 0.0
    %991 = vmatpush.msra.mxu0 0.0
    %992 = vmatpush.msra.mxu0 0.0
    %993 = vmatpush.msra.mxu0 0.0
    %994 = vmatpush.msra.mxu0 0.0
    %995 = vmatpush.msra.mxu0 0.0
    %996 = vmatpush.msra.mxu0 0.0
    %997 = vmatpush.msra.mxu0 0.0
    %998 = vmatpush.msra.mxu0 0.0
    %999 = vmatpush.msra.mxu0 0.0
    %1000 = vmatpush.msra.mxu0 0.0
    %1001 = vmatpush.msra.mxu0 0.0
    %1002 = vmatpush.msra.mxu0 0.0
    %1003 = vmatpush.msra.mxu0 %v400
    %1004 = vmatmul.f32.gmra.mxu0 %v986
    %v1005 = vpop.f32.mrf.mxu0
    %v1006 = vadd.f32 0.0, %v1005
    %1007 = vdwg.mxu0
    %v1009 = vsel %vm445, %v978, 0
    %1011 = vmatpush.msra.mxu0 0.0
    %1012 = vmatpush.msra.mxu0 0.0
    %1013 = vmatpush.msra.mxu0 0.0
    %1014 = vmatpush.msra.mxu0 0.0
    %1015 = vmatpush.msra.mxu0 0.0
    %1016 = vmatpush.msra.mxu0 0.0
    %1017 = vmatpush.msra.mxu0 0.0
    %1018 = vmatpush.msra.mxu0 0.0
    %1019 = vmatpush.msra.mxu0 0.0
    %1020 = vmatpush.msra.mxu0 0.0
    %1021 = vmatpush.msra.mxu0 0.0
    %1022 = vmatpush.msra.mxu0 0.0
    %1023 = vmatpush.msra.mxu0 0.0
    %1024 = vmatpush.msra.mxu0 0.0
    %1025 = vmatpush.msra.mxu0 0.0
    %1026 = vmatpush.msra.mxu0 %v403
    %1027 = vmatmul.f32.gmra.mxu0 %v1009
    %v1028 = vpop.f32.mrf.mxu0
    %v1029 = vadd.f32 0.0, %v1028
    %1030 = vdwg.mxu0
    %v1031 = vrcp.pop %v981
    %v1032 = vmul.f32 %v981, %v1031
    %v1033 = vsub.f32 1.0, %v1032
    %v1034 = vmul.f32 %v1031, %v1033
    %v1035 = vadd.f32 %v1031, %v1034
    %vm1036 = vweird.f32 %v981
    %vm1037 = vweird.f32 %v1031
    %vm1038 = vmor %vm1036, %vm1037
    %v1039 = vsel %vm1038, %v1031, %v1035
    %v1040 = vand.u32 2147483647, %v981
    %vm1041 = vcmp.eq.f32.partialorder %v1040, 8.507059e+37
    %v1042 = vand.u32 %v981, 2147483648
    %v1043 = vor.u32 1.1754944e-38, %v1042
    %v1044 = vsel %vm1041, %v1043, %v1039
    %v1045 = vrcp.pop %v984
    %v1046 = vmul.f32 %v984, %v1045
    %v1047 = vsub.f32 1.0, %v1046
    %v1048 = vmul.f32 %v1045, %v1047
    %v1049 = vadd.f32 %v1045, %v1048
    %vm1050 = vweird.f32 %v984
    %vm1051 = vweird.f32 %v1045
    %vm1052 = vmor %vm1050, %vm1051
    %v1053 = vsel %vm1052, %v1045, %v1049
    %v1054 = vand.u32 2147483647, %v984
    %vm1055 = vcmp.eq.f32.partialorder %v1054, 8.507059e+37
    %v1056 = vand.u32 %v984, 2147483648
    %v1057 = vor.u32 1.1754944e-38, %v1056
    %v1058 = vsel %vm1055, %v1057, %v1053
    %v1059 = vmul.f32 %v1006, %v1044
    %v1060 = vmul.f32 %v1029, %v1058
    %v1061 = vld [vmem:[%s8 + $0x180] sm:$0xff]
    %v1062 = vld [vmem:[%s8 + $0x188] sm:$0xff]
    %v1063 = vld [vmem:[%s8 + $0x190] sm:$0xff]
    %v1064 = vld [vmem:[%s8 + $0x198] sm:$0xff]
    %v1065 = vld [vmem:[%s8 + $0x1a0] sm:$0xff]
    %v1066 = vld [vmem:[%s8 + $0x1a8] sm:$0xff]
    %v1067 = vld [vmem:[%s8 + $0x1b0] sm:$0xff]
    %v1068 = vld [vmem:[%s8 + $0x1b8] sm:$0xff]
    %v1069 = vld [vmem:[%s8 + $0x1c0] sm:$0xff]
    %v1070 = vld [vmem:[%s8 + $0x1c8] sm:$0xff]
    %v1071 = vld [vmem:[%s8 + $0x1d0] sm:$0xff]
    %v1072 = vld [vmem:[%s8 + $0x1d8] sm:$0xff]
    %v1073 = vld [vmem:[%s8 + $0x1e0] sm:$0xff]
    %v1074 = vld [vmem:[%s8 + $0x1e8] sm:$0xff]
    %v1075 = vld [vmem:[%s8 + $0x1f0] sm:$0xff]
    %v1076 = vld [vmem:[%s8 + $0x1f8] sm:$0xff]
    %1077 = vmatpush.msra.mxu0 %v1076
    %1078 = vmatpush.msra.mxu0 %v1075
    %1079 = vmatpush.msra.mxu0 %v1074
    %1080 = vmatpush.msra.mxu0 %v1073
    %1081 = vmatpush.msra.mxu0 %v1072
    %1082 = vmatpush.msra.mxu0 %v1071
    %1083 = vmatpush.msra.mxu0 %v1070
    %1084 = vmatpush.msra.mxu0 %v1069
    %1085 = vmatpush.msra.mxu0 %v1068
    %1086 = vmatpush.msra.mxu0 %v1067
    %1087 = vmatpush.msra.mxu0 %v1066
    %1088 = vmatpush.msra.mxu0 %v1065
    %1089 = vmatpush.msra.mxu0 %v1064
    %1090 = vmatpush.msra.mxu0 %v1063
    %1091 = vmatpush.msra.mxu0 %v1062
    %1092 = vmatpush.msra.mxu0 %v1061
    %1093 = vmatmul.f32.gmra.mxu0 %v1059
    %v1094 = vpop.f32.mrf.mxu0
    %v1095 = vadd.f32 0.0, %v1094
    %1096 = vmatmul.f32.gmra.mxu0 %v1060
    %v1097 = vpop.f32.mrf.mxu0
    %v1098 = vadd.f32 0.0, %v1097
    %1099 = vdwg.mxu0
    %v1100 = vadd.f32 %v925, %v1095
    %v1101 = vadd.f32 %v926, %v1098
    %v1102 = vld [vmem:[%s9] sm:$0x1]
    %v1104 = vperm.slane %v1102, 0
    %v1106 = vadd.f32 %v1100, %v1104
    %v1107 = vadd.f32 %v1101, %v1104
    %1108 = vst.msk [vmem:[#allocation2] sm:$0xff] %vm54, %v1106
    %1109 = vst.msk [vmem:[#allocation2 + $0x8] sm:$0xff] %vm54, %v1107
    // Predicated region
    $region42: #{tpu_custom_call.1} parent=1 // pred_check
      _
    $region43: #{tpu_custom_call.1} parent=1 // pred_check_branch
      %1111 = sbr.rel (0) target = $region45
    $region44: #{tpu_custom_call.1} parent=1 // pred_region
      %1113 = vsyncadd [#allocation3], 0
      %s1114 = sshll.u32 [#allocation2], 4
      %s1115 = int_to_ptr.vmem [resolvable:$true] %s1114
      %s1116 = sshll.u32 %s10, 4
      %s1117 = int_to_ptr.hbm [resolvable:$true] %s1116
      %1122 = dma.vmem_to_hbm [thread:$0]  %s1115, 256, %s1117, [#allocation3], 128, 128, 8
    $region45: #{tpu_custom_call.1} parent=1 // pred_fallthru
      _
    // Predicated region
    $region46: #{tpu_custom_call.1} parent=1 // pred_check
      _
    $region47: #{tpu_custom_call.1} parent=1 // pred_check_branch
      %1124 = sbr.rel (0) target = $region49
    $region48: #{tpu_custom_call.1} parent=1 // pred_region
      %1126 = dma.done [#allocation3], 256
    $region49: #{tpu_custom_call.1} parent=1 // pred_fallthru
      _
    %1127 = vsyncpa [#allocation3], 1

</llo_original>
